<compile_context>
chip_gen: v6e
topology: v6e:2x2x1
jax: 0.10.0
libtpu: 0.0.40
codegen_flags: <defaults>
</compile_context>

<pallas_src>
import functools

import numpy as np
import jax
import jax.numpy as jnp
from jax.experimental import pallas as pl
from jax.experimental.pallas import tpu as pltpu

_BN_EPS = 1e-5


def _round_up(v, m):
    return (v + m - 1) // m * m


def _vmem_limit_bytes():
    # Generation-aware VMEM budget: half of physical, capped at 64 MiB
    # (v5e/v6e: 128 MiB physical -> 64 MiB; v7x: 64 MiB physical -> 32 MiB).
    phys = 64 * 1024 * 1024
    try:
        phys = int(pltpu.get_tpu_info().vmem_capacity_bytes)
    except Exception:
        pass
    return int(min(phys // 2, 64 * 1024 * 1024))


# ----------------------------------------------------------------------------
# Grid-invariant selection / scatter matrices (built once, become constants).
# Flat padded layout: index p = r*Wpad + c, r in [0, Hp+2), c in [0, Wp+2);
# interior pixel (h, w) sits at p = (h+1)*Wpad + (w+1).
# ----------------------------------------------------------------------------
def _pool_pad_matrix(H, W, Hp, Wp, P1):
    """A[src, i*P1 + dst] = 1: gathers the 4 taps of each 2x2 pool window into
    4 lane-aligned chunks, already placed at the zero-padded flat position."""
    Wpad = Wp + 2
    A = np.zeros((H * W, 4 * P1), np.float32)
    for i, (dy, dx) in enumerate(((0, 0), (0, 1), (1, 0), (1, 1))):
        for h in range(Hp):
            for w in range(Wp):
                src = (2 * h + dy) * W + (2 * w + dx)
                dst = (h + 1) * Wpad + (w + 1)
                A[src, i * P1 + dst] = 1.0
    return A


def _repack_matrix(Hp, Wp, P1):
    """T[h*Wpad + w, (h+1)*Wpad + (w+1)] = 1: moves a conv output (stride-Wpad
    flat layout) into the zero-padded flat layout the next conv consumes,
    zeroing the stride-junk columns and the halo in the same matmul."""
    Wpad = Wp + 2
    T = np.zeros((Hp * Wpad, P1), np.float32)
    for h in range(Hp):
        for w in range(Wp):
            T[h * Wpad + w, (h + 1) * Wpad + (w + 1)] = 1.0
    return T


def _compact_matrix(Hp, Wp, Dp):
    """G[h*Wpad + w, h*Wp + w] = 1: compacts stride-Wpad columns to dense
    (Hp*Wp) pixels so the final store is lane-dense."""
    Wpad = Wp + 2
    G = np.zeros((Hp * Wpad, Dp), np.float32)
    for h in range(Hp):
        for w in range(Wp):
            G[h * Wpad + w, h * Wp + w] = 1.0
    return G


# ----------------------------------------------------------------------------
# Fused kernel: maxpool(2) -> conv3x3+BN+ReLU -> conv3x3+BN+ReLU (one image).
# ----------------------------------------------------------------------------
def _down_fused_kernel(x_ref, a_ref, t_ref, g_ref,
                       w1_ref, s1_ref, b1_ref, w2_ref, s2_ref, b2_ref,
                       o_ref, col1_ref, col2_ref, *, wpad):
    C_in = x_ref.shape[1]
    C_mid = w1_ref.shape[0]
    L1, P1 = t_ref.shape

    # ---- Stage 1: MaxPool2d(2) fused with the zero-padded flat relayout.
    # One selection matmul gathers the 4 window taps into 4 lane-aligned
    # chunks of the padded layout; 3 VPU maxes reduce them.
    xf = x_ref[0]                                                  # (C_in, H*W)
    g4 = jnp.dot(xf, a_ref[...], preferred_element_type=jnp.float32)  # (C_in, 4*P1)
    buf1 = jnp.maximum(
        jnp.maximum(g4[:, 0 * P1:1 * P1], g4[:, 1 * P1:2 * P1]),
        jnp.maximum(g4[:, 2 * P1:3 * P1], g4[:, 3 * P1:4 * P1]))   # (C_in, P1)

    # ---- Stage 2: conv1 3x3 as ONE deep matmul via im2col scratch; BN+ReLU.
    for k in range(9):                                             # unrolled taps
        off = (k // 3) * wpad + (k % 3)
        col1_ref[k * C_in:(k + 1) * C_in, :] = buf1[:, off:off + L1]
    y1 = jnp.dot(w1_ref[...], col1_ref[...], preferred_element_type=jnp.float32)
    y1 = jnp.maximum(y1 * s1_ref[...] + b1_ref[...], 0.0)         # (C_mid, L1)

    # ---- Stage 3: repack conv1 output into the zero-padded flat layout that
    # conv2 consumes (scatter matmul also zeroes junk columns + halo).
    buf2 = jnp.dot(y1, t_ref[...], preferred_element_type=jnp.float32)  # (C_mid, P1)

    # ---- Stage 4: conv2 3x3 (one deep matmul) + BN + ReLU.
    for k in range(9):
        off = (k // 3) * wpad + (k % 3)
        col2_ref[k * C_mid:(k + 1) * C_mid, :] = buf2[:, off:off + L1]
    y2 = jnp.dot(w2_ref[...], col2_ref[...], preferred_element_type=jnp.float32)
    y2 = jnp.maximum(y2 * s2_ref[...] + b2_ref[...], 0.0)         # (C_out, L1)

    # ---- Stage 5: compact stride-Wpad columns -> dense pixels; lane-dense store.
    o_ref[0] = jnp.dot(y2, g_ref[...],
                       preferred_element_type=jnp.float32).astype(o_ref.dtype)


def _fold_bn(gamma, beta, mean, var):
    inv = gamma / jnp.sqrt(var + _BN_EPS)
    scale = inv.reshape(-1, 1).astype(jnp.float32)
    shift = (beta - mean * inv).reshape(-1, 1).astype(jnp.float32)
    return scale, shift


@jax.jit
def down_forward(x, w1, g1, b1, m1, v1, w2, g2, b2, m2, v2):
    N, C_in, H, W = x.shape
    C_mid = w1.shape[0]
    C_out = w2.shape[0]
    Hp, Wp = H // 2, W // 2            # MaxPool2d(2) floor behaviour
    Wpad, Hpad = Wp + 2, Hp + 2
    L1 = Hp * Wpad                     # conv output length (padded-width stride)
    P1 = _round_up(max(Hpad * Wpad, 2 * Wpad + 2 + L1), 128)   # padded flat len
    Dp = _round_up(Hp * Wp, 128)       # lane-dense final store width
    HW = H * W

    xf = x.reshape(N, C_in, HW)        # free reshape (contiguous NCHW)

    # Grid-invariant constants (trace-time numpy -> embedded constants).
    A = jnp.asarray(_pool_pad_matrix(H, W, Hp, Wp, P1))
    T = jnp.asarray(_repack_matrix(Hp, Wp, P1))
    G = jnp.asarray(_compact_matrix(Hp, Wp, Dp))

    # Weights: (O, I, 3, 3) -> (O, 9*I), row order (ky*3+kx)*C_in + c.
    w1f = jnp.transpose(w1, (0, 2, 3, 1)).reshape(C_mid, 9 * C_in).astype(jnp.float32)
    w2f = jnp.transpose(w2, (0, 2, 3, 1)).reshape(C_out, 9 * C_mid).astype(jnp.float32)
    s1, sh1 = _fold_bn(g1, b1, m1, v1)
    s2, sh2 = _fold_bn(g2, b2, m2, v2)

    yf = pl.pallas_call(
        functools.partial(_down_fused_kernel, wpad=Wpad),
        out_shape=jax.ShapeDtypeStruct((N, C_out, Dp), x.dtype),
        grid_spec=pltpu.PrefetchScalarGridSpec(
            num_scalar_prefetch=0,
            grid=(N,),
            in_specs=[
                pl.BlockSpec((1, C_in, HW), lambda n: (n, 0, 0)),      # image
                pl.BlockSpec((HW, 4 * P1), lambda n: (0, 0)),          # pool gather
                pl.BlockSpec((L1, P1), lambda n: (0, 0)),              # repack
                pl.BlockSpec((L1, Dp), lambda n: (0, 0)),              # compact
                pl.BlockSpec((C_mid, 9 * C_in), lambda n: (0, 0)),     # w1
                pl.BlockSpec((C_mid, 1), lambda n: (0, 0)),            # bn1 scale
                pl.BlockSpec((C_mid, 1), lambda n: (0, 0)),            # bn1 shift
                pl.BlockSpec((C_out, 9 * C_mid), lambda n: (0, 0)),    # w2
                pl.BlockSpec((C_out, 1), lambda n: (0, 0)),            # bn2 scale
                pl.BlockSpec((C_out, 1), lambda n: (0, 0)),            # bn2 shift
            ],
            out_specs=pl.BlockSpec((1, C_out, Dp), lambda n: (n, 0, 0)),
            scratch_shapes=[pltpu.VMEM((9 * C_in, L1), jnp.float32),   # im2col 1
                            pltpu.VMEM((9 * C_mid, L1), jnp.float32)], # im2col 2
        ),
        compiler_params=pltpu.CompilerParams(
            dimension_semantics=("parallel",),
            vmem_limit_bytes=_vmem_limit_bytes(),
        ),
    )(xf, A, T, G, w1f, s1, sh1, w2f, s2, sh2)

    # Only post-processing left: drop lane padding of the tiny final output.
    return yf[:, :, :Hp * Wp].reshape(N, C_out, Hp, Wp)


# ----------------------------------------------------------------------------
# Pure-JAX reference (same eval-mode BN semantics)
# ----------------------------------------------------------------------------
def _ref_down(x, w1, g1, b1, m1, v1, w2, g2, b2, m2, v2):
    N, C, H, W = x.shape
    Hp, Wp = H // 2, W // 2
    p = x[:, :, : 2 * Hp, : 2 * Wp].reshape(N, C, Hp, 2, Wp, 2).max(axis=(3, 5))

    def cbr(z, w, g, b, m, v):
        y = jax.lax.conv_general_dilated(
            z, w, (1, 1), "SAME", dimension_numbers=("NCHW", "OIHW", "NCHW"))
        y = (y - m.reshape(1, -1, 1, 1)) / jnp.sqrt(v.reshape(1, -1, 1, 1) + _BN_EPS)
        y = y * g.reshape(1, -1, 1, 1) + b.reshape(1, -1, 1, 1)
        return jnp.maximum(y, 0.0)

    return cbr(cbr(p, w1, g1, b1, m1, v1), w2, g2, b2, m2, v2)


if __name__ == "__main__":
    key = jax.random.PRNGKey(0)
    keys = jax.random.split(key, 9)

    N, C_in, C_out, H, W = 2, 4, 8, 16, 16   # Down(4, 8) on a 16x16 image

    x = jax.random.normal(keys[0], (N, C_in, H, W), dtype=jnp.float32)

    # conv1 / bn1
    bound1 = 1.0 / jnp.sqrt(C_in * 9.0)
    w1 = jax.random.uniform(keys[1], (C_out, C_in, 3, 3), jnp.float32, -bound1, bound1)
    g1 = jax.random.uniform(keys[2], (C_out,), jnp.float32, 0.5, 1.5)
    b1 = 0.1 * jax.random.normal(keys[3], (C_out,), jnp.float32)
    m1 = 0.1 * jax.random.normal(keys[4], (C_out,), jnp.float32)
    v1 = jax.random.uniform(keys[5], (C_out,), jnp.float32, 0.5, 1.5)

    # conv2 / bn2
    bound2 = 1.0 / jnp.sqrt(C_out * 9.0)
    w2 = jax.random.uniform(keys[6], (C_out, C_out, 3, 3), jnp.float32, -bound2, bound2)
    g2 = jax.random.uniform(keys[7], (C_out,), jnp.float32, 0.5, 1.5)
    b2 = 0.1 * jax.random.normal(keys[8], (C_out,), jnp.float32)
    m2 = 0.05 * jnp.ones((C_out,), jnp.float32)
    v2 = jnp.linspace(0.8, 1.2, C_out, dtype=jnp.float32)

    y = down_forward(x, w1, g1, b1, m1, v1, w2, g2, b2, m2, v2)
    jax.block_until_ready(y)

    y_ref = _ref_down(x, w1, g1, b1, m1, v1, w2, g2, b2, m2, v2)

    assert y.shape == (N, C_out, H // 2, W // 2), y.shape
    assert jnp.allclose(y, y_ref, atol=1e-4, rtol=1e-4), float(jnp.max(jnp.abs(y - y_ref)))

    print("KERNEL_OK")
</pallas_src>

<mosaic_0001>
module attributes {stable_mosaic.version = 11 : i64} {
  func.func @_down_fused_kernel(%arg0: i32, %arg1: memref<1x4x256xf32, #tpu.memory_space<vmem>>, %arg2: memref<256x512xf32, #tpu.memory_space<vmem>>, %arg3: memref<80x128xf32, #tpu.memory_space<vmem>>, %arg4: memref<80x128xf32, #tpu.memory_space<vmem>>, %arg5: memref<8x36xf32, #tpu.memory_space<vmem>>, %arg6: memref<8x1xf32, #tpu.memory_space<vmem>>, %arg7: memref<8x1xf32, #tpu.memory_space<vmem>>, %arg8: memref<8x72xf32, #tpu.memory_space<vmem>>, %arg9: memref<8x1xf32, #tpu.memory_space<vmem>>, %arg10: memref<8x1xf32, #tpu.memory_space<vmem>>, %arg11: memref<1x8x128xf32, #tpu.memory_space<vmem>>, %arg12: memref<36x80xf32, #tpu.memory_space<vmem>>, %arg13: memref<72x80xf32, #tpu.memory_space<vmem>>) attributes {dimension_semantics = [#tpu.dimension_semantics<parallel>], iteration_bounds = array<i64: 2>, scalar_prefetch = 0 : i64, scratch_operands = 2 : i64, tpu.core_type = #tpu.core_type<tc>, window_params = [{transform_indices = @transform_0, window_bounds = array<i64: 1, 4, 256>}, {pipeline_mode = #tpu.pipeline_mode<synchronous>, transform_indices = @transform_1, window_bounds = array<i64: 256, 512>}, {pipeline_mode = #tpu.pipeline_mode<synchronous>, transform_indices = @transform_2, window_bounds = array<i64: 80, 128>}, {pipeline_mode = #tpu.pipeline_mode<synchronous>, transform_indices = @transform_3, window_bounds = array<i64: 80, 128>}, {pipeline_mode = #tpu.pipeline_mode<synchronous>, transform_indices = @transform_4, window_bounds = array<i64: 8, 36>}, {pipeline_mode = #tpu.pipeline_mode<synchronous>, transform_indices = @transform_5, window_bounds = array<i64: 8, 1>}, {pipeline_mode = #tpu.pipeline_mode<synchronous>, transform_indices = @transform_6, window_bounds = array<i64: 8, 1>}, {pipeline_mode = #tpu.pipeline_mode<synchronous>, transform_indices = @transform_7, window_bounds = array<i64: 8, 72>}, {pipeline_mode = #tpu.pipeline_mode<synchronous>, transform_indices = @transform_8, window_bounds = array<i64: 8, 1>}, {pipeline_mode = #tpu.pipeline_mode<synchronous>, transform_indices = @transform_9, window_bounds = array<i64: 8, 1>}, {transform_indices = @transform_10, window_bounds = array<i64: 1, 8, 128>}]} {
    %c0 = arith.constant 0 : index
    %c0_0 = arith.constant 0 : index
    %c0_1 = arith.constant 0 : index
    %0 = vector.load %arg1[%c0, %c0_0, %c0_1] : memref<1x4x256xf32, #tpu.memory_space<vmem>>, vector<1x4x256xf32>
    %1 = vector.shape_cast %0 : vector<1x4x256xf32> to vector<4x256xf32>
    %c0_2 = arith.constant 0 : index
    %c0_3 = arith.constant 0 : index
    %2 = vector.load %arg2[%c0_2, %c0_3] : memref<256x512xf32, #tpu.memory_space<vmem>>, vector<256x512xf32>
    %cst = arith.constant dense<0.000000e+00> : vector<4x512xf32>
    %3 = tpu.matmul %1, %2, %cst {dimension_numbers = #tpu.dot_dimension_numbers<[1], [0], [0], [1], [0, 0, 1, 1], [], []>} : vector<4x256xf32>, vector<256x512xf32>, vector<4x512xf32> -> vector<4x512xf32>
    %4 = vector.extract_strided_slice %3 {offsets = [0, 0], sizes = [4, 128], strides = [1, 1]} : vector<4x512xf32> to vector<4x128xf32>
    %5 = vector.extract_strided_slice %3 {offsets = [0, 128], sizes = [4, 128], strides = [1, 1]} : vector<4x512xf32> to vector<4x128xf32>
    %6 = arith.maximumf %4, %5 : vector<4x128xf32>
    %7 = vector.extract_strided_slice %3 {offsets = [0, 256], sizes = [4, 128], strides = [1, 1]} : vector<4x512xf32> to vector<4x128xf32>
    %8 = vector.extract_strided_slice %3 {offsets = [0, 384], sizes = [4, 128], strides = [1, 1]} : vector<4x512xf32> to vector<4x128xf32>
    %9 = arith.maximumf %7, %8 : vector<4x128xf32>
    %10 = arith.maximumf %6, %9 : vector<4x128xf32>
    %11 = vector.extract_strided_slice %10 {offsets = [0, 0], sizes = [4, 80], strides = [1, 1]} : vector<4x128xf32> to vector<4x80xf32>
    %c0_4 = arith.constant 0 : index
    %c0_5 = arith.constant 0 : index
    %12 = vector.load %arg12[%c0_4, %c0_5] : memref<36x80xf32, #tpu.memory_space<vmem>>, vector<4x80xf32>
    tpu.vector_store %arg12[%c0_4, %c0_5], %11 {strides = array<i32>} : memref<36x80xf32, #tpu.memory_space<vmem>>, vector<4x80xf32>,
    %13 = vector.extract_strided_slice %10 {offsets = [0, 1], sizes = [4, 80], strides = [1, 1]} : vector<4x128xf32> to vector<4x80xf32>
    %c4 = arith.constant 4 : index
    %c0_6 = arith.constant 0 : index
    %14 = vector.load %arg12[%c4, %c0_6] : memref<36x80xf32, #tpu.memory_space<vmem>>, vector<4x80xf32>
    tpu.vector_store %arg12[%c4, %c0_6], %13 {strides = array<i32>} : memref<36x80xf32, #tpu.memory_space<vmem>>, vector<4x80xf32>,
    %15 = vector.extract_strided_slice %10 {offsets = [0, 2], sizes = [4, 80], strides = [1, 1]} : vector<4x128xf32> to vector<4x80xf32>
    %c8 = arith.constant 8 : index
    %c0_7 = arith.constant 0 : index
    %16 = vector.load %arg12[%c8, %c0_7] : memref<36x80xf32, #tpu.memory_space<vmem>>, vector<4x80xf32>
    tpu.vector_store %arg12[%c8, %c0_7], %15 {strides = array<i32>} : memref<36x80xf32, #tpu.memory_space<vmem>>, vector<4x80xf32>,
    %17 = vector.extract_strided_slice %10 {offsets = [0, 10], sizes = [4, 80], strides = [1, 1]} : vector<4x128xf32> to vector<4x80xf32>
    %c12 = arith.constant 12 : index
    %c0_8 = arith.constant 0 : index
    %18 = vector.load %arg12[%c12, %c0_8] : memref<36x80xf32, #tpu.memory_space<vmem>>, vector<4x80xf32>
    tpu.vector_store %arg12[%c12, %c0_8], %17 {strides = array<i32>} : memref<36x80xf32, #tpu.memory_space<vmem>>, vector<4x80xf32>,
    %19 = vector.extract_strided_slice %10 {offsets = [0, 11], sizes = [4, 80], strides = [1, 1]} : vector<4x128xf32> to vector<4x80xf32>
    %c16 = arith.constant 16 : index
    %c0_9 = arith.constant 0 : index
    %20 = vector.load %arg12[%c16, %c0_9] : memref<36x80xf32, #tpu.memory_space<vmem>>, vector<4x80xf32>
    tpu.vector_store %arg12[%c16, %c0_9], %19 {strides = array<i32>} : memref<36x80xf32, #tpu.memory_space<vmem>>, vector<4x80xf32>,
    %21 = vector.extract_strided_slice %10 {offsets = [0, 12], sizes = [4, 80], strides = [1, 1]} : vector<4x128xf32> to vector<4x80xf32>
    %c20 = arith.constant 20 : index
    %c0_10 = arith.constant 0 : index
    %22 = vector.load %arg12[%c20, %c0_10] : memref<36x80xf32, #tpu.memory_space<vmem>>, vector<4x80xf32>
    tpu.vector_store %arg12[%c20, %c0_10], %21 {strides = array<i32>} : memref<36x80xf32, #tpu.memory_space<vmem>>, vector<4x80xf32>,
    %23 = vector.extract_strided_slice %10 {offsets = [0, 20], sizes = [4, 80], strides = [1, 1]} : vector<4x128xf32> to vector<4x80xf32>
    %c24 = arith.constant 24 : index
    %c0_11 = arith.constant 0 : index
    %24 = vector.load %arg12[%c24, %c0_11] : memref<36x80xf32, #tpu.memory_space<vmem>>, vector<4x80xf32>
    tpu.vector_store %arg12[%c24, %c0_11], %23 {strides = array<i32>} : memref<36x80xf32, #tpu.memory_space<vmem>>, vector<4x80xf32>,
    %25 = vector.extract_strided_slice %10 {offsets = [0, 21], sizes = [4, 80], strides = [1, 1]} : vector<4x128xf32> to vector<4x80xf32>
    %c28 = arith.constant 28 : index
    %c0_12 = arith.constant 0 : index
    %26 = vector.load %arg12[%c28, %c0_12] : memref<36x80xf32, #tpu.memory_space<vmem>>, vector<4x80xf32>
    tpu.vector_store %arg12[%c28, %c0_12], %25 {strides = array<i32>} : memref<36x80xf32, #tpu.memory_space<vmem>>, vector<4x80xf32>,
    %27 = vector.extract_strided_slice %10 {offsets = [0, 22], sizes = [4, 80], strides = [1, 1]} : vector<4x128xf32> to vector<4x80xf32>
    %c32 = arith.constant 32 : index
    %c0_13 = arith.constant 0 : index
    %28 = vector.load %arg12[%c32, %c0_13] : memref<36x80xf32, #tpu.memory_space<vmem>>, vector<4x80xf32>
    tpu.vector_store %arg12[%c32, %c0_13], %27 {strides = array<i32>} : memref<36x80xf32, #tpu.memory_space<vmem>>, vector<4x80xf32>,
    %c0_14 = arith.constant 0 : index
    %c0_15 = arith.constant 0 : index
    %29 = vector.load %arg5[%c0_14, %c0_15] : memref<8x36xf32, #tpu.memory_space<vmem>>, vector<8x36xf32>
    %c0_16 = arith.constant 0 : index
    %c0_17 = arith.constant 0 : index
    %30 = vector.load %arg12[%c0_16, %c0_17] : memref<36x80xf32, #tpu.memory_space<vmem>>, vector<36x80xf32>
    %cst_18 = arith.constant dense<0.000000e+00> : vector<8x80xf32>
    %31 = tpu.matmul %29, %30, %cst_18 {dimension_numbers = #tpu.dot_dimension_numbers<[1], [0], [0], [1], [0, 0, 1, 1], [], []>} : vector<8x36xf32>, vector<36x80xf32>, vector<8x80xf32> -> vector<8x80xf32>
    %c0_19 = arith.constant 0 : index
    %c0_20 = arith.constant 0 : index
    %32 = vector.load %arg6[%c0_19, %c0_20] : memref<8x1xf32, #tpu.memory_space<vmem>>, vector<8x1xf32>
    %33 = vector.broadcast %32 : vector<8x1xf32> to vector<8x80xf32>
    %34 = arith.mulf %31, %33 : vector<8x80xf32>
    %c0_21 = arith.constant 0 : index
    %c0_22 = arith.constant 0 : index
    %35 = vector.load %arg7[%c0_21, %c0_22] : memref<8x1xf32, #tpu.memory_space<vmem>>, vector<8x1xf32>
    %36 = vector.broadcast %35 : vector<8x1xf32> to vector<8x80xf32>
    %37 = arith.addf %34, %36 : vector<8x80xf32>
    %cst_23 = arith.constant 0.000000e+00 : f32
    %38 = vector.broadcast %cst_23 : f32 to vector<8x80xf32>
    %39 = arith.maximumf %37, %38 : vector<8x80xf32>
    %c0_24 = arith.constant 0 : index
    %c0_25 = arith.constant 0 : index
    %40 = vector.load %arg3[%c0_24, %c0_25] : memref<80x128xf32, #tpu.memory_space<vmem>>, vector<80x128xf32>
    %cst_26 = arith.constant dense<0.000000e+00> : vector<8x128xf32>
    %41 = tpu.matmul %39, %40, %cst_26 {dimension_numbers = #tpu.dot_dimension_numbers<[1], [0], [0], [1], [0, 0, 1, 1], [], []>} : vector<8x80xf32>, vector<80x128xf32>, vector<8x128xf32> -> vector<8x128xf32>
    %42 = vector.extract_strided_slice %41 {offsets = [0, 0], sizes = [8, 80], strides = [1, 1]} : vector<8x128xf32> to vector<8x80xf32>
    %c0_27 = arith.constant 0 : index
    %c0_28 = arith.constant 0 : index
    %43 = vector.load %arg13[%c0_27, %c0_28] : memref<72x80xf32, #tpu.memory_space<vmem>>, vector<8x80xf32>
    tpu.vector_store %arg13[%c0_27, %c0_28], %42 {strides = array<i32>} : memref<72x80xf32, #tpu.memory_space<vmem>>, vector<8x80xf32>,
    %44 = vector.extract_strided_slice %41 {offsets = [0, 1], sizes = [8, 80], strides = [1, 1]} : vector<8x128xf32> to vector<8x80xf32>
    %c8_29 = arith.constant 8 : index
    %c0_30 = arith.constant 0 : index
    %45 = vector.load %arg13[%c8_29, %c0_30] : memref<72x80xf32, #tpu.memory_space<vmem>>, vector<8x80xf32>
    tpu.vector_store %arg13[%c8_29, %c0_30], %44 {strides = array<i32>} : memref<72x80xf32, #tpu.memory_space<vmem>>, vector<8x80xf32>,
    %46 = vector.extract_strided_slice %41 {offsets = [0, 2], sizes = [8, 80], strides = [1, 1]} : vector<8x128xf32> to vector<8x80xf32>
    %c16_31 = arith.constant 16 : index
    %c0_32 = arith.constant 0 : index
    %47 = vector.load %arg13[%c16_31, %c0_32] : memref<72x80xf32, #tpu.memory_space<vmem>>, vector<8x80xf32>
    tpu.vector_store %arg13[%c16_31, %c0_32], %46 {strides = array<i32>} : memref<72x80xf32, #tpu.memory_space<vmem>>, vector<8x80xf32>,
    %48 = vector.extract_strided_slice %41 {offsets = [0, 10], sizes = [8, 80], strides = [1, 1]} : vector<8x128xf32> to vector<8x80xf32>
    %c24_33 = arith.constant 24 : index
    %c0_34 = arith.constant 0 : index
    %49 = vector.load %arg13[%c24_33, %c0_34] : memref<72x80xf32, #tpu.memory_space<vmem>>, vector<8x80xf32>
    tpu.vector_store %arg13[%c24_33, %c0_34], %48 {strides = array<i32>} : memref<72x80xf32, #tpu.memory_space<vmem>>, vector<8x80xf32>,
    %50 = vector.extract_strided_slice %41 {offsets = [0, 11], sizes = [8, 80], strides = [1, 1]} : vector<8x128xf32> to vector<8x80xf32>
    %c32_35 = arith.constant 32 : index
    %c0_36 = arith.constant 0 : index
    %51 = vector.load %arg13[%c32_35, %c0_36] : memref<72x80xf32, #tpu.memory_space<vmem>>, vector<8x80xf32>
    tpu.vector_store %arg13[%c32_35, %c0_36], %50 {strides = array<i32>} : memref<72x80xf32, #tpu.memory_space<vmem>>, vector<8x80xf32>,
    %52 = vector.extract_strided_slice %41 {offsets = [0, 12], sizes = [8, 80], strides = [1, 1]} : vector<8x128xf32> to vector<8x80xf32>
    %c40 = arith.constant 40 : index
    %c0_37 = arith.constant 0 : index
    %53 = vector.load %arg13[%c40, %c0_37] : memref<72x80xf32, #tpu.memory_space<vmem>>, vector<8x80xf32>
    tpu.vector_store %arg13[%c40, %c0_37], %52 {strides = array<i32>} : memref<72x80xf32, #tpu.memory_space<vmem>>, vector<8x80xf32>,
    %54 = vector.extract_strided_slice %41 {offsets = [0, 20], sizes = [8, 80], strides = [1, 1]} : vector<8x128xf32> to vector<8x80xf32>
    %c48 = arith.constant 48 : index
    %c0_38 = arith.constant 0 : index
    %55 = vector.load %arg13[%c48, %c0_38] : memref<72x80xf32, #tpu.memory_space<vmem>>, vector<8x80xf32>
    tpu.vector_store %arg13[%c48, %c0_38], %54 {strides = array<i32>} : memref<72x80xf32, #tpu.memory_space<vmem>>, vector<8x80xf32>,
    %56 = vector.extract_strided_slice %41 {offsets = [0, 21], sizes = [8, 80], strides = [1, 1]} : vector<8x128xf32> to vector<8x80xf32>
    %c56 = arith.constant 56 : index
    %c0_39 = arith.constant 0 : index
    %57 = vector.load %arg13[%c56, %c0_39] : memref<72x80xf32, #tpu.memory_space<vmem>>, vector<8x80xf32>
    tpu.vector_store %arg13[%c56, %c0_39], %56 {strides = array<i32>} : memref<72x80xf32, #tpu.memory_space<vmem>>, vector<8x80xf32>,
    %58 = vector.extract_strided_slice %41 {offsets = [0, 22], sizes = [8, 80], strides = [1, 1]} : vector<8x128xf32> to vector<8x80xf32>
    %c64 = arith.constant 64 : index
    %c0_40 = arith.constant 0 : index
    %59 = vector.load %arg13[%c64, %c0_40] : memref<72x80xf32, #tpu.memory_space<vmem>>, vector<8x80xf32>
    tpu.vector_store %arg13[%c64, %c0_40], %58 {strides = array<i32>} : memref<72x80xf32, #tpu.memory_space<vmem>>, vector<8x80xf32>,
    %c0_41 = arith.constant 0 : index
    %c0_42 = arith.constant 0 : index
    %60 = vector.load %arg8[%c0_41, %c0_42] : memref<8x72xf32, #tpu.memory_space<vmem>>, vector<8x72xf32>
    %c0_43 = arith.constant 0 : index
    %c0_44 = arith.constant 0 : index
    %61 = vector.load %arg13[%c0_43, %c0_44] : memref<72x80xf32, #tpu.memory_space<vmem>>, vector<72x80xf32>
    %cst_45 = arith.constant dense<0.000000e+00> : vector<8x80xf32>
    %62 = tpu.matmul %60, %61, %cst_45 {dimension_numbers = #tpu.dot_dimension_numbers<[1], [0], [0], [1], [0, 0, 1, 1], [], []>} : vector<8x72xf32>, vector<72x80xf32>, vector<8x80xf32> -> vector<8x80xf32>
    %c0_46 = arith.constant 0 : index
    %c0_47 = arith.constant 0 : index
    %63 = vector.load %arg9[%c0_46, %c0_47] : memref<8x1xf32, #tpu.memory_space<vmem>>, vector<8x1xf32>
    %64 = vector.broadcast %63 : vector<8x1xf32> to vector<8x80xf32>
    %65 = arith.mulf %62, %64 : vector<8x80xf32>
    %c0_48 = arith.constant 0 : index
    %c0_49 = arith.constant 0 : index
    %66 = vector.load %arg10[%c0_48, %c0_49] : memref<8x1xf32, #tpu.memory_space<vmem>>, vector<8x1xf32>
    %67 = vector.broadcast %66 : vector<8x1xf32> to vector<8x80xf32>
    %68 = arith.addf %65, %67 : vector<8x80xf32>
    %cst_50 = arith.constant 0.000000e+00 : f32
    %69 = vector.broadcast %cst_50 : f32 to vector<8x80xf32>
    %70 = arith.maximumf %68, %69 : vector<8x80xf32>
    %c0_51 = arith.constant 0 : index
    %c0_52 = arith.constant 0 : index
    %71 = vector.load %arg4[%c0_51, %c0_52] : memref<80x128xf32, #tpu.memory_space<vmem>>, vector<80x128xf32>
    %cst_53 = arith.constant dense<0.000000e+00> : vector<8x128xf32>
    %72 = tpu.matmul %70, %71, %cst_53 {dimension_numbers = #tpu.dot_dimension_numbers<[1], [0], [0], [1], [0, 0, 1, 1], [], []>} : vector<8x80xf32>, vector<80x128xf32>, vector<8x128xf32> -> vector<8x128xf32>
    %c0_54 = arith.constant 0 : index
    %c0_55 = arith.constant 0 : index
    %c0_56 = arith.constant 0 : index
    %73 = vector.load %arg11[%c0_54, %c0_55, %c0_56] : memref<1x8x128xf32, #tpu.memory_space<vmem>>, vector<1x8x128xf32>
    %74 = vector.shape_cast %73 : vector<1x8x128xf32> to vector<8x128xf32>
    %75 = vector.shape_cast %72 : vector<8x128xf32> to vector<1x8x128xf32>
    tpu.vector_store %arg11[%c0_54, %c0_55, %c0_56], %75 {strides = array<i32>} : memref<1x8x128xf32, #tpu.memory_space<vmem>>, vector<1x8x128xf32>,
    return
  }
  func.func @transform_0(%arg0: i32) -> (i32, i32, i32) {
    %c0_i32 = arith.constant 0 : i32
    %c0_i32_0 = arith.constant 0 : i32
    %c0_i32_1 = arith.constant 0 : i32
    return %arg0, %c0_i32, %c0_i32_0 : i32, i32, i32
  }
  func.func @transform_1(%arg0: i32) -> (i32, i32) {
    %c0_i32 = arith.constant 0 : i32
    %c0_i32_0 = arith.constant 0 : i32
    %c0_i32_1 = arith.constant 0 : i32
    return %c0_i32, %c0_i32_0 : i32, i32
  }
  func.func @transform_2(%arg0: i32) -> (i32, i32) {
    %c0_i32 = arith.constant 0 : i32
    %c0_i32_0 = arith.constant 0 : i32
    %c0_i32_1 = arith.constant 0 : i32
    return %c0_i32, %c0_i32_0 : i32, i32
  }
  func.func @transform_3(%arg0: i32) -> (i32, i32) {
    %c0_i32 = arith.constant 0 : i32
    %c0_i32_0 = arith.constant 0 : i32
    %c0_i32_1 = arith.constant 0 : i32
    return %c0_i32, %c0_i32_0 : i32, i32
  }
  func.func @transform_4(%arg0: i32) -> (i32, i32) {
    %c0_i32 = arith.constant 0 : i32
    %c0_i32_0 = arith.constant 0 : i32
    %c0_i32_1 = arith.constant 0 : i32
    return %c0_i32, %c0_i32_0 : i32, i32
  }
  func.func @transform_5(%arg0: i32) -> (i32, i32) {
    %c0_i32 = arith.constant 0 : i32
    %c0_i32_0 = arith.constant 0 : i32
    %c0_i32_1 = arith.constant 0 : i32
    return %c0_i32, %c0_i32_0 : i32, i32
  }
  func.func @transform_6(%arg0: i32) -> (i32, i32) {
    %c0_i32 = arith.constant 0 : i32
    %c0_i32_0 = arith.constant 0 : i32
    %c0_i32_1 = arith.constant 0 : i32
    return %c0_i32, %c0_i32_0 : i32, i32
  }
  func.func @transform_7(%arg0: i32) -> (i32, i32) {
    %c0_i32 = arith.constant 0 : i32
    %c0_i32_0 = arith.constant 0 : i32
    %c0_i32_1 = arith.constant 0 : i32
    return %c0_i32, %c0_i32_0 : i32, i32
  }
  func.func @transform_8(%arg0: i32) -> (i32, i32) {
    %c0_i32 = arith.constant 0 : i32
    %c0_i32_0 = arith.constant 0 : i32
    %c0_i32_1 = arith.constant 0 : i32
    return %c0_i32, %c0_i32_0 : i32, i32
  }
  func.func @transform_9(%arg0: i32) -> (i32, i32) {
    %c0_i32 = arith.constant 0 : i32
    %c0_i32_0 = arith.constant 0 : i32
    %c0_i32_1 = arith.constant 0 : i32
    return %c0_i32, %c0_i32_0 : i32, i32
  }
  func.func @transform_10(%arg0: i32) -> (i32, i32, i32) {
    %c0_i32 = arith.constant 0 : i32
    %c0_i32_0 = arith.constant 0 : i32
    %c0_i32_1 = arith.constant 0 : i32
    return %arg0, %c0_i32, %c0_i32_0 : i32, i32, i32
  }
}

</mosaic_0001>

<llo_original>
// kernel: down_forward.1
$region0: #{down_forward.1}
  #allocation0 [shape = 'u32[]', space=smem, size = 0x4, offset = 0x4, fixed_abs, tag = 'smem constant byte address 0x4 - core index']
  #allocation1 [shape = 'u32[144,128]{1,0:T(1,128)}', space=vmem, size = 0x12000, scoped, tag = 'internal scratch']
  #allocation2 [shape = 'f32[36,80]{1,0:T(8,128)}', space=vmem, size = 0x5000, scoped, tag = 'scratch operand']
  #allocation3 [shape = 'f32[72,80]{1,0:T(8,128)}', space=vmem, size = 0x9000, scoped, tag = 'scratch operand']
  %s0 = inlined_call_operand.vmem [shape: f32[2,4,256], index: 0, kind: input, shape index: {}]
  %s1 = inlined_call_operand.hbm [shape: f32[256,512], index: 1, kind: input, shape index: {}]
  %s2 = inlined_call_operand.vmem [shape: f32[80,128], index: 2, kind: input, shape index: {}]
  %s3 = inlined_call_operand.vmem [shape: f32[80,128], index: 3, kind: input, shape index: {}]
  %s4 = inlined_call_operand.vmem [shape: f32[8,36], index: 4, kind: input, shape index: {}]
  %s5 = inlined_call_operand.vmem [shape: f32[8,1], index: 5, kind: input, shape index: {}]
  %s6 = inlined_call_operand.vmem [shape: f32[8,1], index: 6, kind: input, shape index: {}]
  %s7 = inlined_call_operand.vmem [shape: f32[8,72], index: 7, kind: input, shape index: {}]
  %s8 = inlined_call_operand.vmem [shape: f32[8,1], index: 8, kind: input, shape index: {}]
  %s9 = inlined_call_operand.vmem [shape: f32[8,1], index: 9, kind: input, shape index: {}]
  %s10 = inlined_call_operand.vmem [shape: f32[2,8,128], index: 10, kind: output, shape index: {}]
  %s11 = sld [smem:[#allocation0]]
  $region77: #{down_forward.1} parent=0
    _
  %s13 = ssub.s32 1, %s11
  %s14 = scalar_select 0, %s13, %s11
  $region1: #{down_forward.1} parent=0
    #allocation4 [shape = 'u8[524288]{0}', space=vmem, size = 0x80000, scoped, tag = 'input window, operand 1, single buffered']
    #allocation5 [shape = 's32[2]{0}', space=sflag, size = 0x8, scoped, tag = 'scoped memory for down_forward.1']
    %15 = vsyncpa [#allocation5], 0
    loop: start=0, step=1, limit=4
    $region2: #{down_forward.1} parent=1 // loop_pre_header
      _
    $region3: #{down_forward.1} parent=1 // loop_header
      %s17 = sphi 0, %s21
      %p18 = scmp.ge.s32.totalorder %s17, 4
      %s27 = sphi 0, %s29
      %s30 = sphi 0, %s27
      %s31 = sphi 0, %s30
      %s47 = sphi 0, %s31
      %s51 = sphi 0, %s51
      %s53 = sphi 0, %s51
      %s54 = sphi 0, %s53
      %s68 = sphi 0, %s54
      %s72 = sphi 0, %s72
      %s74 = sphi 0, %s72
      %s75 = sphi 0, %s74
      %s89 = sphi 0, %s75
      %s93 = sphi 0, %s93
      %s95 = sphi 0, %s93
      %s96 = sphi 0, %s95
      %s110 = sphi 0, %s96
      %s114 = sphi 0, %s114
      %s116 = sphi 0, %s114
      %s117 = sphi 0, %s116
      %s131 = sphi 0, %s117
      %s135 = sphi 0, %s135
      %s137 = sphi 0, %s135
      %s138 = sphi 0, %s137
      %s152 = sphi 0, %s138
      %s156 = sphi 0, %s156
      %s158 = sphi 0, %s156
      %s159 = sphi 0, %s158
      %s173 = sphi 0, %s159
      %s177 = sphi 0, %s177
      %s179 = sphi 0, %s177
      %s180 = sphi 0, %s179
      %s194 = sphi 0, %s180
      %s198 = sphi 0, %s198
      %s200 = sphi 0, %s198
      %s201 = sphi 0, %s200
      %s215 = sphi 0, %s201
      %s219 = sphi 0, %s219
      %s221 = sphi 0, %s219
      %s222 = sphi 0, %s221
      %s236 = sphi 0, %s222
      %s242 = sphi 0, %s244
      %s245 = sphi 0, %s242
      %s246 = sphi 0, %s245
      %s262 = sphi 0, %s246
    $region4: #{down_forward.1} parent=1 // loop_header_branch
      %20 = sbr.rel (%p18) target = $region8
    $region5: #{down_forward.1} parent=1 // loop_body
      %s22 = ssub.s32 %s17, 1
      %s23 = ssub.s32 %s17, 2
      %s24 = sadd.s32 %s17, 1
      %s25 = ssub.s32 %s17, %s24
      %p26 = scmp.eq.s32.totalorder %s25, 0
      %s28 = sadd.s32 %s27, 1
      %s29 = scalar_select %p26, %s27, %s28
      %p32 = pneg %p26
      %p33 = scmp.eq.s32.totalorder %s17, 1
      %p34 = por %p32, %p33
      %p35 = scmp.ne.s32.totalorder %s27, %s30
      %p36 = scmp.eq.s32.totalorder %s17, 0
      %p37 = por %p35, %p36
      %p38 = scmp.ne.s32.totalorder %s27, %s30
      %p39 = scmp.eq.s32.totalorder %s22, 1
      %p40 = por %p38, %p39
      %p41 = scmp.ne.s32.totalorder %s30, %s31
      %p42 = scmp.eq.s32.totalorder %s22, 0
      %p43 = por %p41, %p42
      %p44 = scmp.ne.s32.totalorder %s30, %s31
      %p45 = scmp.eq.s32.totalorder %s23, 1
      %p46 = por %p44, %p45
      %p48 = scmp.ne.s32.totalorder %s31, %s47
      %p49 = scmp.eq.s32.totalorder %s23, 0
      %p50 = por %p48, %p49
      %s52 = sadd.s32 %s51, 1
      %p55 = scmp.eq.s32.totalorder %s17, 1
      %p56 = scmp.ne.s32.totalorder %s51, %s53
      %p57 = scmp.eq.s32.totalorder %s17, 0
      %p58 = por %p56, %p57
      %p59 = scmp.ne.s32.totalorder %s51, %s53
      %p60 = scmp.eq.s32.totalorder %s22, 1
      %p61 = por %p59, %p60
      %p62 = scmp.ne.s32.totalorder %s53, %s54
      %p63 = scmp.eq.s32.totalorder %s22, 0
      %p64 = por %p62, %p63
      %p65 = scmp.ne.s32.totalorder %s53, %s54
      %p66 = scmp.eq.s32.totalorder %s23, 1
      %p67 = por %p65, %p66
      %p69 = scmp.ne.s32.totalorder %s54, %s68
      %p70 = scmp.eq.s32.totalorder %s23, 0
      %p71 = por %p69, %p70
      %s73 = sadd.s32 %s72, 1
      %p76 = scmp.eq.s32.totalorder %s17, 1
      %p77 = scmp.ne.s32.totalorder %s72, %s74
      %p78 = scmp.eq.s32.totalorder %s17, 0
      %p79 = por %p77, %p78
      %p80 = scmp.ne.s32.totalorder %s72, %s74
      %p81 = scmp.eq.s32.totalorder %s22, 1
      %p82 = por %p80, %p81
      %p83 = scmp.ne.s32.totalorder %s74, %s75
      %p84 = scmp.eq.s32.totalorder %s22, 0
      %p85 = por %p83, %p84
      %p86 = scmp.ne.s32.totalorder %s74, %s75
      %p87 = scmp.eq.s32.totalorder %s23, 1
      %p88 = por %p86, %p87
      %p90 = scmp.ne.s32.totalorder %s75, %s89
      %p91 = scmp.eq.s32.totalorder %s23, 0
      %p92 = por %p90, %p91
      %s94 = sadd.s32 %s93, 1
      %p97 = scmp.eq.s32.totalorder %s17, 1
      %p98 = scmp.ne.s32.totalorder %s93, %s95
      %p99 = scmp.eq.s32.totalorder %s17, 0
      %p100 = por %p98, %p99
      %p101 = scmp.ne.s32.totalorder %s93, %s95
      %p102 = scmp.eq.s32.totalorder %s22, 1
      %p103 = por %p101, %p102
      %p104 = scmp.ne.s32.totalorder %s95, %s96
      %p105 = scmp.eq.s32.totalorder %s22, 0
      %p106 = por %p104, %p105
      %p107 = scmp.ne.s32.totalorder %s95, %s96
      %p108 = scmp.eq.s32.totalorder %s23, 1
      %p109 = por %p107, %p108
      %p111 = scmp.ne.s32.totalorder %s96, %s110
      %p112 = scmp.eq.s32.totalorder %s23, 0
      %p113 = por %p111, %p112
      %s115 = sadd.s32 %s114, 1
      %p118 = scmp.eq.s32.totalorder %s17, 1
      %p119 = scmp.ne.s32.totalorder %s114, %s116
      %p120 = scmp.eq.s32.totalorder %s17, 0
      %p121 = por %p119, %p120
      %p122 = scmp.ne.s32.totalorder %s114, %s116
      %p123 = scmp.eq.s32.totalorder %s22, 1
      %p124 = por %p122, %p123
      %p125 = scmp.ne.s32.totalorder %s116, %s117
      %p126 = scmp.eq.s32.totalorder %s22, 0
      %p127 = por %p125, %p126
      %p128 = scmp.ne.s32.totalorder %s116, %s117
      %p129 = scmp.eq.s32.totalorder %s23, 1
      %p130 = por %p128, %p129
      %p132 = scmp.ne.s32.totalorder %s117, %s131
      %p133 = scmp.eq.s32.totalorder %s23, 0
      %p134 = por %p132, %p133
      %s136 = sadd.s32 %s135, 1
      %p139 = scmp.eq.s32.totalorder %s17, 1
      %p140 = scmp.ne.s32.totalorder %s135, %s137
      %p141 = scmp.eq.s32.totalorder %s17, 0
      %p142 = por %p140, %p141
      %p143 = scmp.ne.s32.totalorder %s135, %s137
      %p144 = scmp.eq.s32.totalorder %s22, 1
      %p145 = por %p143, %p144
      %p146 = scmp.ne.s32.totalorder %s137, %s138
      %p147 = scmp.eq.s32.totalorder %s22, 0
      %p148 = por %p146, %p147
      %p149 = scmp.ne.s32.totalorder %s137, %s138
      %p150 = scmp.eq.s32.totalorder %s23, 1
      %p151 = por %p149, %p150
      %p153 = scmp.ne.s32.totalorder %s138, %s152
      %p154 = scmp.eq.s32.totalorder %s23, 0
      %p155 = por %p153, %p154
      %s157 = sadd.s32 %s156, 1
      %p160 = scmp.eq.s32.totalorder %s17, 1
      %p161 = scmp.ne.s32.totalorder %s156, %s158
      %p162 = scmp.eq.s32.totalorder %s17, 0
      %p163 = por %p161, %p162
      %p164 = scmp.ne.s32.totalorder %s156, %s158
      %p165 = scmp.eq.s32.totalorder %s22, 1
      %p166 = por %p164, %p165
      %p167 = scmp.ne.s32.totalorder %s158, %s159
      %p168 = scmp.eq.s32.totalorder %s22, 0
      %p169 = por %p167, %p168
      %p170 = scmp.ne.s32.totalorder %s158, %s159
      %p171 = scmp.eq.s32.totalorder %s23, 1
      %p172 = por %p170, %p171
      %p174 = scmp.ne.s32.totalorder %s159, %s173
      %p175 = scmp.eq.s32.totalorder %s23, 0
      %p176 = por %p174, %p175
      %s178 = sadd.s32 %s177, 1
      %p181 = scmp.eq.s32.totalorder %s17, 1
      %p182 = scmp.ne.s32.totalorder %s177, %s179
      %p183 = scmp.eq.s32.totalorder %s17, 0
      %p184 = por %p182, %p183
      %p185 = scmp.ne.s32.totalorder %s177, %s179
      %p186 = scmp.eq.s32.totalorder %s22, 1
      %p187 = por %p185, %p186
      %p188 = scmp.ne.s32.totalorder %s179, %s180
      %p189 = scmp.eq.s32.totalorder %s22, 0
      %p190 = por %p188, %p189
      %p191 = scmp.ne.s32.totalorder %s179, %s180
      %p192 = scmp.eq.s32.totalorder %s23, 1
      %p193 = por %p191, %p192
      %p195 = scmp.ne.s32.totalorder %s180, %s194
      %p196 = scmp.eq.s32.totalorder %s23, 0
      %p197 = por %p195, %p196
      %s199 = sadd.s32 %s198, 1
      %p202 = scmp.eq.s32.totalorder %s17, 1
      %p203 = scmp.ne.s32.totalorder %s198, %s200
      %p204 = scmp.eq.s32.totalorder %s17, 0
      %p205 = por %p203, %p204
      %p206 = scmp.ne.s32.totalorder %s198, %s200
      %p207 = scmp.eq.s32.totalorder %s22, 1
      %p208 = por %p206, %p207
      %p209 = scmp.ne.s32.totalorder %s200, %s201
      %p210 = scmp.eq.s32.totalorder %s22, 0
      %p211 = por %p209, %p210
      %p212 = scmp.ne.s32.totalorder %s200, %s201
      %p213 = scmp.eq.s32.totalorder %s23, 1
      %p214 = por %p212, %p213
      %p216 = scmp.ne.s32.totalorder %s201, %s215
      %p217 = scmp.eq.s32.totalorder %s23, 0
      %p218 = por %p216, %p217
      %s220 = sadd.s32 %s219, 1
      %p223 = scmp.eq.s32.totalorder %s17, 1
      %p224 = scmp.ne.s32.totalorder %s219, %s221
      %p225 = scmp.eq.s32.totalorder %s17, 0
      %p226 = por %p224, %p225
      %p227 = scmp.ne.s32.totalorder %s219, %s221
      %p228 = scmp.eq.s32.totalorder %s22, 1
      %p229 = por %p227, %p228
      %p230 = scmp.ne.s32.totalorder %s221, %s222
      %p231 = scmp.eq.s32.totalorder %s22, 0
      %p232 = por %p230, %p231
      %p233 = scmp.ne.s32.totalorder %s221, %s222
      %p234 = scmp.eq.s32.totalorder %s23, 1
      %p235 = por %p233, %p234
      %p237 = scmp.ne.s32.totalorder %s222, %s236
      %p238 = scmp.eq.s32.totalorder %s23, 0
      %p239 = por %p237, %p238
      %s240 = ssub.s32 %s17, %s24
      %p241 = scmp.eq.s32.totalorder %s240, 0
      %s243 = sadd.s32 %s242, 1
      %s244 = scalar_select %p241, %s242, %s243
      %p247 = pneg %p241
      %p248 = scmp.eq.s32.totalorder %s17, 1
      %p249 = por %p247, %p248
      %p250 = scmp.ne.s32.totalorder %s242, %s245
      %p251 = scmp.eq.s32.totalorder %s17, 0
      %p252 = por %p250, %p251
      %p253 = scmp.ne.s32.totalorder %s242, %s245
      %p254 = scmp.eq.s32.totalorder %s22, 1
      %p255 = por %p253, %p254
      %p256 = scmp.ne.s32.totalorder %s245, %s246
      %p257 = scmp.eq.s32.totalorder %s22, 0
      %p258 = por %p256, %p257
      %p259 = scmp.ne.s32.totalorder %s245, %s246
      %p260 = scmp.eq.s32.totalorder %s23, 1
      %p261 = por %p259, %p260
      %p263 = scmp.ne.s32.totalorder %s246, %s262
      %p264 = scmp.eq.s32.totalorder %s23, 0
      %p265 = por %p263, %p264
      %p266 = scmp.le.s32.totalorder 1, %s17
      %p267 = scmp.lt.s32.totalorder %s17, 3
      %p268 = pnand %p266, %p267
      %p269 = pneg %p268
      // Predicated region
      $region9: #{down_forward.1} parent=5 // pred_check
        _
      $region10: #{down_forward.1} parent=5 // pred_check_branch
        %271 = sbr.rel (%p268) target = $region12
      $region11: #{down_forward.1} parent=5 // pred_region
        %s272 = ssub.s32 %s17, 1
        // Predicated region
        $region13: #{down_forward.1} parent=11 // pred_check
          %p273 = pneg %p64
        $region14: #{down_forward.1} parent=11 // pred_check_branch
          %275 = sbr.rel (%p273) target = $region16
        $region15: #{down_forward.1} parent=11 // pred_region
          %s277 = ssub.s32 16384, 16384
          %278 = vsyncadd [#allocation5], %s277
          %s279 = sshll.u32 [#allocation4], 4
          %s280 = int_to_ptr.vmem [resolvable:$true] %s279
          %285 = dma.hbm_to_vmem [thread:$0]  %s1, 16384, %s280, [#allocation5], 512, 512, 32
        $region16: #{down_forward.1} parent=11 // pred_fallthru
          _
        // Predicated region
        $region17: #{down_forward.1} parent=11 // pred_check
          %p286 = pneg %p85
        $region18: #{down_forward.1} parent=11 // pred_check_branch
          %288 = sbr.rel (%p286) target = $region20
        $region19: #{down_forward.1} parent=11 // pred_region
          _
        $region20: #{down_forward.1} parent=11 // pred_fallthru
          _
        // Predicated region
        $region21: #{down_forward.1} parent=11 // pred_check
          %p289 = pneg %p106
        $region22: #{down_forward.1} parent=11 // pred_check_branch
          %291 = sbr.rel (%p289) target = $region24
        $region23: #{down_forward.1} parent=11 // pred_region
          _
        $region24: #{down_forward.1} parent=11 // pred_fallthru
          _
        // Predicated region
        $region25: #{down_forward.1} parent=11 // pred_check
          %p292 = pneg %p127
        $region26: #{down_forward.1} parent=11 // pred_check_branch
          %294 = sbr.rel (%p292) target = $region28
        $region27: #{down_forward.1} parent=11 // pred_region
          _
        $region28: #{down_forward.1} parent=11 // pred_fallthru
          _
        // Predicated region
        $region29: #{down_forward.1} parent=11 // pred_check
          %p295 = pneg %p148
        $region30: #{down_forward.1} parent=11 // pred_check_branch
          %297 = sbr.rel (%p295) target = $region32
        $region31: #{down_forward.1} parent=11 // pred_region
          _
        $region32: #{down_forward.1} parent=11 // pred_fallthru
          _
        // Predicated region
        $region33: #{down_forward.1} parent=11 // pred_check
          %p298 = pneg %p169
        $region34: #{down_forward.1} parent=11 // pred_check_branch
          %300 = sbr.rel (%p298) target = $region36
        $region35: #{down_forward.1} parent=11 // pred_region
          _
        $region36: #{down_forward.1} parent=11 // pred_fallthru
          _
        // Predicated region
        $region37: #{down_forward.1} parent=11 // pred_check
          %p301 = pneg %p190
        $region38: #{down_forward.1} parent=11 // pred_check_branch
          %303 = sbr.rel (%p301) target = $region40
        $region39: #{down_forward.1} parent=11 // pred_region
          _
        $region40: #{down_forward.1} parent=11 // pred_fallthru
          _
        // Predicated region
        $region41: #{down_forward.1} parent=11 // pred_check
          %p304 = pneg %p211
        $region42: #{down_forward.1} parent=11 // pred_check_branch
          %306 = sbr.rel (%p304) target = $region44
        $region43: #{down_forward.1} parent=11 // pred_region
          _
        $region44: #{down_forward.1} parent=11 // pred_fallthru
          _
        // Predicated region
        $region45: #{down_forward.1} parent=11 // pred_check
          %p307 = pneg %p232
        $region46: #{down_forward.1} parent=11 // pred_check_branch
          %309 = sbr.rel (%p307) target = $region48
        $region47: #{down_forward.1} parent=11 // pred_region
          _
        $region48: #{down_forward.1} parent=11 // pred_fallthru
          _
      $region12: #{down_forward.1} parent=5 // pred_fallthru
        _
      %p310 = scmp.lt.s32.totalorder %s17, 2
      // Predicated region
      $region49: #{down_forward.1} parent=5 // pred_check
        %p311 = pneg %p310
      $region50: #{down_forward.1} parent=5 // pred_check_branch
        %313 = sbr.rel (%p311) target = $region52
      $region51: #{down_forward.1} parent=5 // pred_region
        // Predicated region
        $region53: #{down_forward.1} parent=51 // pred_check
          %p314 = pneg %p37
        $region54: #{down_forward.1} parent=51 // pred_check_branch
          %316 = sbr.rel (%p314) target = $region56
        $region55: #{down_forward.1} parent=51 // pred_region
          %p317 = scmp.lt.s32.totalorder %s17, 1
          %s318 = scalar_select %p317, %s17, 1
          %s319 = smul.addr %s318, 2
          %s320 = smul.addr %s319, 4
          %s321 = scalar_lea.vmem %s0, %s320
        $region56: #{down_forward.1} parent=51 // pred_fallthru
          _
      $region52: #{down_forward.1} parent=5 // pred_fallthru
        _
      %p322 = scmp.le.s32.totalorder 1, %s17
      %p323 = scmp.lt.s32.totalorder %s17, 3
      %p324 = pnand %p322, %p323
      %p325 = pneg %p324
      // Predicated region
      $region57: #{down_forward.1} parent=5 // pred_check
        _
      $region58: #{down_forward.1} parent=5 // pred_check_branch
        %327 = sbr.rel (%p324) target = $region60
      $region59: #{down_forward.1} parent=5 // pred_region
        %s328 = ssub.s32 %s17, 1
        // Predicated region
        $region61: #{down_forward.1} parent=59 // pred_check
          %p329 = pneg %p64
        $region62: #{down_forward.1} parent=59 // pred_check_branch
          %331 = sbr.rel (%p329) target = $region64
        $region63: #{down_forward.1} parent=59 // pred_region
          %332 = dma.done [#allocation5], 16384
        $region64: #{down_forward.1} parent=59 // pred_fallthru
          _
        %p333 = scmp.lt.s32.totalorder %s22, 1
        %s334 = scalar_select %p333, %s22, 1
        %s335 = smul.addr %s334, 2
        %s336 = smul.addr %s335, 4
        %s337 = scalar_lea.vmem %s0, %s336
        %p338 = pneg %p43
        %p339 = pneg %p40
        %p340 = pneg %p64
        %p341 = pneg %p61
        %p342 = pneg %p85
        %p343 = pneg %p82
        %p344 = pneg %p106
        %p345 = pneg %p103
        %p346 = pneg %p127
        %p347 = pneg %p124
        %p348 = pneg %p148
        %p349 = pneg %p145
        %p350 = pneg %p169
        %p351 = pneg %p166
        %p352 = pneg %p190
        %p353 = pneg %p187
        %p354 = pneg %p211
        %p355 = pneg %p208
        %p356 = pneg %p232
        %p357 = pneg %p229
        %p358 = pneg %p258
        %p359 = pneg %p255
        %p360 = scmp.lt.s32.totalorder %s22, 1
        %s361 = scalar_select %p360, %s22, 1
        %s362 = smul.addr %s361, 8
        %s363 = scalar_lea.vmem %s10, %s362
        %p364 = scmp.lt.s32.totalorder %s22, 1
        %s365 = scalar_select %p364, %s22, 1
        %s366 = smul.addr %s365, 2
        %s367 = smul.addr %s366, 4
        %s368 = scalar_lea.vmem %s0, %s367
        %p369 = scmp.lt.s32.totalorder %s22, 1
        %s370 = scalar_select %p369, %s22, 1
        %s371 = smul.addr %s370, 8
        %s372 = scalar_lea.vmem %s10, %s371
        %v373 = vld [vmem:[%s368] sm:$0xff]
        %v374 = vld [vmem:[#allocation4] sm:$0xff]
        %v375 = vld [vmem:[#allocation4 + $0x8] sm:$0xff]
        %v376 = vld [vmem:[#allocation4 + $0x10] sm:$0xff]
        %v377 = vld [vmem:[#allocation4 + $0x18] sm:$0xff]
        %v378 = vld [vmem:[#allocation4 + $0x20] sm:$0xff]
        %v379 = vld [vmem:[#allocation4 + $0x28] sm:$0xff]
        %v380 = vld [vmem:[#allocation4 + $0x30] sm:$0xff]
        %v381 = vld [vmem:[#allocation4 + $0x38] sm:$0xff]
        %v382 = vld [vmem:[#allocation4 + $0x40] sm:$0xff]
        %v383 = vld [vmem:[#allocation4 + $0x48] sm:$0xff]
        %v384 = vld [vmem:[#allocation4 + $0x50] sm:$0xff]
        %v385 = vld [vmem:[#allocation4 + $0x58] sm:$0xff]
        %v386 = vld [vmem:[#allocation4 + $0x60] sm:$0xff]
        %v387 = vld [vmem:[#allocation4 + $0x68] sm:$0xff]
        %v388 = vld [vmem:[#allocation4 + $0x70] sm:$0xff]
        %v389 = vld [vmem:[#allocation4 + $0x78] sm:$0xff]
        %v390 = vld [vmem:[#allocation4 + $0x80] sm:$0xff]
        %v391 = vld [vmem:[#allocation4 + $0x88] sm:$0xff]
        %v392 = vld [vmem:[#allocation4 + $0x90] sm:$0xff]
        %v393 = vld [vmem:[#allocation4 + $0x98] sm:$0xff]
        %v394 = vld [vmem:[#allocation4 + $0xa0] sm:$0xff]
        %v395 = vld [vmem:[#allocation4 + $0xa8] sm:$0xff]
        %v396 = vld [vmem:[#allocation4 + $0xb0] sm:$0xff]
        %v397 = vld [vmem:[#allocation4 + $0xb8] sm:$0xff]
        %v398 = vld [vmem:[#allocation4 + $0xc0] sm:$0xff]
        %v399 = vld [vmem:[#allocation4 + $0xc8] sm:$0xff]
        %v400 = vld [vmem:[#allocation4 + $0xd0] sm:$0xff]
        %v401 = vld [vmem:[#allocation4 + $0xd8] sm:$0xff]
        %v402 = vld [vmem:[#allocation4 + $0xe0] sm:$0xff]
        %v403 = vld [vmem:[#allocation4 + $0xe8] sm:$0xff]
        %v404 = vld [vmem:[#allocation4 + $0xf0] sm:$0xff]
        %v405 = vld [vmem:[#allocation4 + $0xf8] sm:$0xff]
        %v406 = vld [vmem:[#allocation4 + $0x100] sm:$0xff]
        %v407 = vld [vmem:[#allocation4 + $0x108] sm:$0xff]
        %v408 = vld [vmem:[#allocation4 + $0x110] sm:$0xff]
        %v409 = vld [vmem:[#allocation4 + $0x118] sm:$0xff]
        %v410 = vld [vmem:[#allocation4 + $0x120] sm:$0xff]
        %v411 = vld [vmem:[#allocation4 + $0x128] sm:$0xff]
        %v412 = vld [vmem:[#allocation4 + $0x130] sm:$0xff]
        %v413 = vld [vmem:[#allocation4 + $0x138] sm:$0xff]
        %v414 = vld [vmem:[#allocation4 + $0x140] sm:$0xff]
        %v415 = vld [vmem:[#allocation4 + $0x148] sm:$0xff]
        %v416 = vld [vmem:[#allocation4 + $0x150] sm:$0xff]
        %v417 = vld [vmem:[#allocation4 + $0x158] sm:$0xff]
        %v418 = vld [vmem:[#allocation4 + $0x160] sm:$0xff]
        %v419 = vld [vmem:[#allocation4 + $0x168] sm:$0xff]
        %v420 = vld [vmem:[#allocation4 + $0x170] sm:$0xff]
        %v421 = vld [vmem:[#allocation4 + $0x178] sm:$0xff]
        %v422 = vld [vmem:[#allocation4 + $0x180] sm:$0xff]
        %v423 = vld [vmem:[#allocation4 + $0x188] sm:$0xff]
        %v424 = vld [vmem:[#allocation4 + $0x190] sm:$0xff]
        %v425 = vld [vmem:[#allocation4 + $0x198] sm:$0xff]
        %v426 = vld [vmem:[#allocation4 + $0x1a0] sm:$0xff]
        %v427 = vld [vmem:[#allocation4 + $0x1a8] sm:$0xff]
        %v428 = vld [vmem:[#allocation4 + $0x1b0] sm:$0xff]
        %v429 = vld [vmem:[#allocation4 + $0x1b8] sm:$0xff]
        %v430 = vld [vmem:[#allocation4 + $0x1c0] sm:$0xff]
        %v431 = vld [vmem:[#allocation4 + $0x1c8] sm:$0xff]
        %v432 = vld [vmem:[#allocation4 + $0x1d0] sm:$0xff]
        %v433 = vld [vmem:[#allocation4 + $0x1d8] sm:$0xff]
        %v434 = vld [vmem:[#allocation4 + $0x1e0] sm:$0xff]
        %v435 = vld [vmem:[#allocation4 + $0x1e8] sm:$0xff]
        %v436 = vld [vmem:[#allocation4 + $0x1f0] sm:$0xff]
        %v437 = vld [vmem:[#allocation4 + $0x1f8] sm:$0xff]
        %v438 = vld [vmem:[#allocation4 + $0x200] sm:$0xff]
        %v439 = vld [vmem:[#allocation4 + $0x208] sm:$0xff]
        %v440 = vld [vmem:[#allocation4 + $0x210] sm:$0xff]
        %v441 = vld [vmem:[#allocation4 + $0x218] sm:$0xff]
        %v442 = vld [vmem:[#allocation4 + $0x220] sm:$0xff]
        %v443 = vld [vmem:[#allocation4 + $0x228] sm:$0xff]
        %v444 = vld [vmem:[#allocation4 + $0x230] sm:$0xff]
        %v445 = vld [vmem:[#allocation4 + $0x238] sm:$0xff]
        %v446 = vld [vmem:[#allocation4 + $0x240] sm:$0xff]
        %v447 = vld [vmem:[#allocation4 + $0x248] sm:$0xff]
        %v448 = vld [vmem:[#allocation4 + $0x250] sm:$0xff]
        %v449 = vld [vmem:[#allocation4 + $0x258] sm:$0xff]
        %v450 = vld [vmem:[#allocation4 + $0x260] sm:$0xff]
        %v451 = vld [vmem:[#allocation4 + $0x268] sm:$0xff]
        %v452 = vld [vmem:[#allocation4 + $0x270] sm:$0xff]
        %v453 = vld [vmem:[#allocation4 + $0x278] sm:$0xff]
        %v454 = vld [vmem:[#allocation4 + $0x280] sm:$0xff]
        %v455 = vld [vmem:[#allocation4 + $0x288] sm:$0xff]
        %v456 = vld [vmem:[#allocation4 + $0x290] sm:$0xff]
        %v457 = vld [vmem:[#allocation4 + $0x298] sm:$0xff]
        %v458 = vld [vmem:[#allocation4 + $0x2a0] sm:$0xff]
        %v459 = vld [vmem:[#allocation4 + $0x2a8] sm:$0xff]
        %v460 = vld [vmem:[#allocation4 + $0x2b0] sm:$0xff]
        %v461 = vld [vmem:[#allocation4 + $0x2b8] sm:$0xff]
        %v462 = vld [vmem:[#allocation4 + $0x2c0] sm:$0xff]
        %v463 = vld [vmem:[#allocation4 + $0x2c8] sm:$0xff]
        %v464 = vld [vmem:[#allocation4 + $0x2d0] sm:$0xff]
        %v465 = vld [vmem:[#allocation4 + $0x2d8] sm:$0xff]
        %v466 = vld [vmem:[#allocation4 + $0x2e0] sm:$0xff]
        %v467 = vld [vmem:[#allocation4 + $0x2e8] sm:$0xff]
        %v468 = vld [vmem:[#allocation4 + $0x2f0] sm:$0xff]
        %v469 = vld [vmem:[#allocation4 + $0x2f8] sm:$0xff]
        %v470 = vld [vmem:[#allocation4 + $0x300] sm:$0xff]
        %v471 = vld [vmem:[#allocation4 + $0x308] sm:$0xff]
        %v472 = vld [vmem:[#allocation4 + $0x310] sm:$0xff]
        %v473 = vld [vmem:[#allocation4 + $0x318] sm:$0xff]
        %v474 = vld [vmem:[#allocation4 + $0x320] sm:$0xff]
        %v475 = vld [vmem:[#allocation4 + $0x328] sm:$0xff]
        %v476 = vld [vmem:[#allocation4 + $0x330] sm:$0xff]
        %v477 = vld [vmem:[#allocation4 + $0x338] sm:$0xff]
        %v478 = vld [vmem:[#allocation4 + $0x340] sm:$0xff]
        %v479 = vld [vmem:[#allocation4 + $0x348] sm:$0xff]
        %v480 = vld [vmem:[#allocation4 + $0x350] sm:$0xff]
        %v481 = vld [vmem:[#allocation4 + $0x358] sm:$0xff]
        %v482 = vld [vmem:[#allocation4 + $0x360] sm:$0xff]
        %v483 = vld [vmem:[#allocation4 + $0x368] sm:$0xff]
        %v484 = vld [vmem:[#allocation4 + $0x370] sm:$0xff]
        %v485 = vld [vmem:[#allocation4 + $0x378] sm:$0xff]
        %v486 = vld [vmem:[#allocation4 + $0x380] sm:$0xff]
        %v487 = vld [vmem:[#allocation4 + $0x388] sm:$0xff]
        %v488 = vld [vmem:[#allocation4 + $0x390] sm:$0xff]
        %v489 = vld [vmem:[#allocation4 + $0x398] sm:$0xff]
        %v490 = vld [vmem:[#allocation4 + $0x3a0] sm:$0xff]
        %v491 = vld [vmem:[#allocation4 + $0x3a8] sm:$0xff]
        %v492 = vld [vmem:[#allocation4 + $0x3b0] sm:$0xff]
        %v493 = vld [vmem:[#allocation4 + $0x3b8] sm:$0xff]
        %v494 = vld [vmem:[#allocation4 + $0x3c0] sm:$0xff]
        %v495 = vld [vmem:[#allocation4 + $0x3c8] sm:$0xff]
        %v496 = vld [vmem:[#allocation4 + $0x3d0] sm:$0xff]
        %v497 = vld [vmem:[#allocation4 + $0x3d8] sm:$0xff]
        %v498 = vld [vmem:[#allocation4 + $0x3e0] sm:$0xff]
        %v499 = vld [vmem:[#allocation4 + $0x3e8] sm:$0xff]
        %v500 = vld [vmem:[#allocation4 + $0x3f0] sm:$0xff]
        %v501 = vld [vmem:[#allocation4 + $0x3f8] sm:$0xff]
        %v503 = vcombine.high %v373, %v373
        %505 = vmatprep.subr.mxu0 %v435
        %506 = vmatpush1.msra.mxu0 %v434
        %507 = vmatprep.subr.mxu0 %v431
        %508 = vmatpush1.msra.mxu0 %v430
        %509 = vmatprep.subr.mxu0 %v427
        %510 = vmatpush1.msra.mxu0 %v426
        %511 = vmatprep.subr.mxu0 %v423
        %512 = vmatpush1.msra.mxu0 %v422
        %513 = vmatprep.subr.mxu0 %v419
        %514 = vmatpush1.msra.mxu0 %v418
        %515 = vmatprep.subr.mxu0 %v415
        %516 = vmatpush1.msra.mxu0 %v414
        %517 = vmatprep.subr.mxu0 %v411
        %518 = vmatpush1.msra.mxu0 %v410
        %519 = vmatprep.subr.mxu0 %v407
        %520 = vmatpush1.msra.mxu0 %v406
        %521 = vmatprep.subr.mxu0 %v403
        %522 = vmatpush1.msra.mxu0 %v402
        %523 = vmatprep.subr.mxu0 %v399
        %524 = vmatpush1.msra.mxu0 %v398
        %525 = vmatprep.subr.mxu0 %v395
        %526 = vmatpush1.msra.mxu0 %v394
        %527 = vmatprep.subr.mxu0 %v391
        %528 = vmatpush1.msra.mxu0 %v390
        %529 = vmatprep.subr.mxu0 %v387
        %530 = vmatpush1.msra.mxu0 %v386
        %531 = vmatprep.subr.mxu0 %v383
        %532 = vmatpush1.msra.mxu0 %v382
        %533 = vmatprep.subr.mxu0 %v379
        %534 = vmatpush1.msra.mxu0 %v378
        %535 = vmatprep.subr.mxu0 %v375
        %536 = vmatpush1.msra.mxu0 %v374
        %537 = vmatprep.subr.mxu0 %v499
        %538 = vmatpush2.msra.mxu0 %v498
        %539 = vmatprep.subr.mxu0 %v495
        %540 = vmatpush2.msra.mxu0 %v494
        %541 = vmatprep.subr.mxu0 %v491
        %542 = vmatpush2.msra.mxu0 %v490
        %543 = vmatprep.subr.mxu0 %v487
        %544 = vmatpush2.msra.mxu0 %v486
        %545 = vmatprep.subr.mxu0 %v483
        %546 = vmatpush2.msra.mxu0 %v482
        %547 = vmatprep.subr.mxu0 %v479
        %548 = vmatpush2.msra.mxu0 %v478
        %549 = vmatprep.subr.mxu0 %v475
        %550 = vmatpush2.msra.mxu0 %v474
        %551 = vmatprep.subr.mxu0 %v471
        %552 = vmatpush2.msra.mxu0 %v470
        %553 = vmatprep.subr.mxu0 %v467
        %554 = vmatpush2.msra.mxu0 %v466
        %555 = vmatprep.subr.mxu0 %v463
        %556 = vmatpush2.msra.mxu0 %v462
        %557 = vmatprep.subr.mxu0 %v459
        %558 = vmatpush2.msra.mxu0 %v458
        %559 = vmatprep.subr.mxu0 %v455
        %560 = vmatpush2.msra.mxu0 %v454
        %561 = vmatprep.subr.mxu0 %v451
        %562 = vmatpush2.msra.mxu0 %v450
        %563 = vmatprep.subr.mxu0 %v447
        %564 = vmatpush2.msra.mxu0 %v446
        %565 = vmatprep.subr.mxu0 %v443
        %566 = vmatpush2.msra.mxu0 %v442
        %567 = vmatprep.subr.mxu0 %v439
        %568 = vmatpush2.msra.mxu0 %v438
        %569 = vmatprep.mubr.f32.mxu0 %v503
        %570 = vmatmul.mubr.f32.gmra.mxu0 %v373
        %v571 = vpop.f32.mrf.mxu0
        %v572 = vadd.f32 0.0, %v571
        %v573 = vpop.f32.mrf.mxu0
        %v574 = vadd.f32 0.0, %v573
        %575 = vdwg.mxu0
        %576 = vmatprep.subr.mxu0 %v437
        %577 = vmatpush1.msra.mxu0 %v436
        %578 = vmatprep.subr.mxu0 %v433
        %579 = vmatpush1.msra.mxu0 %v432
        %580 = vmatprep.subr.mxu0 %v429
        %581 = vmatpush1.msra.mxu0 %v428
        %582 = vmatprep.subr.mxu0 %v425
        %583 = vmatpush1.msra.mxu0 %v424
        %584 = vmatprep.subr.mxu0 %v421
        %585 = vmatpush1.msra.mxu0 %v420
        %586 = vmatprep.subr.mxu0 %v417
        %587 = vmatpush1.msra.mxu0 %v416
        %588 = vmatprep.subr.mxu0 %v413
        %589 = vmatpush1.msra.mxu0 %v412
        %590 = vmatprep.subr.mxu0 %v409
        %591 = vmatpush1.msra.mxu0 %v408
        %592 = vmatprep.subr.mxu0 %v405
        %593 = vmatpush1.msra.mxu0 %v404
        %594 = vmatprep.subr.mxu0 %v401
        %595 = vmatpush1.msra.mxu0 %v400
        %596 = vmatprep.subr.mxu0 %v397
        %597 = vmatpush1.msra.mxu0 %v396
        %598 = vmatprep.subr.mxu0 %v393
        %599 = vmatpush1.msra.mxu0 %v392
        %600 = vmatprep.subr.mxu0 %v389
        %601 = vmatpush1.msra.mxu0 %v388
        %602 = vmatprep.subr.mxu0 %v385
        %603 = vmatpush1.msra.mxu0 %v384
        %604 = vmatprep.subr.mxu0 %v381
        %605 = vmatpush1.msra.mxu0 %v380
        %606 = vmatprep.subr.mxu0 %v377
        %607 = vmatpush1.msra.mxu0 %v376
        %608 = vmatprep.subr.mxu0 %v501
        %609 = vmatpush2.msra.mxu0 %v500
        %610 = vmatprep.subr.mxu0 %v497
        %611 = vmatpush2.msra.mxu0 %v496
        %612 = vmatprep.subr.mxu0 %v493
        %613 = vmatpush2.msra.mxu0 %v492
        %614 = vmatprep.subr.mxu0 %v489
        %615 = vmatpush2.msra.mxu0 %v488
        %616 = vmatprep.subr.mxu0 %v485
        %617 = vmatpush2.msra.mxu0 %v484
        %618 = vmatprep.subr.mxu0 %v481
        %619 = vmatpush2.msra.mxu0 %v480
        %620 = vmatprep.subr.mxu0 %v477
        %621 = vmatpush2.msra.mxu0 %v476
        %622 = vmatprep.subr.mxu0 %v473
        %623 = vmatpush2.msra.mxu0 %v472
        %624 = vmatprep.subr.mxu0 %v469
        %625 = vmatpush2.msra.mxu0 %v468
        %626 = vmatprep.subr.mxu0 %v465
        %627 = vmatpush2.msra.mxu0 %v464
        %628 = vmatprep.subr.mxu0 %v461
        %629 = vmatpush2.msra.mxu0 %v460
        %630 = vmatprep.subr.mxu0 %v457
        %631 = vmatpush2.msra.mxu0 %v456
        %632 = vmatprep.subr.mxu0 %v453
        %633 = vmatpush2.msra.mxu0 %v452
        %634 = vmatprep.subr.mxu0 %v449
        %635 = vmatpush2.msra.mxu0 %v448
        %636 = vmatprep.subr.mxu0 %v445
        %637 = vmatpush2.msra.mxu0 %v444
        %638 = vmatprep.subr.mxu0 %v441
        %639 = vmatpush2.msra.mxu0 %v440
        %640 = vmatprep.mubr.f32.mxu0 %v503
        %641 = vmatmul.mubr.f32.gmra.mxu0 %v373
        %v642 = vpop.f32.mrf.mxu0
        %v643 = vadd.f32 0.0, %v642
        %v644 = vpop.f32.mrf.mxu0
        %v645 = vadd.f32 0.0, %v644
        %646 = vdwg.mxu0
        %v647 = vmax.f32 %v572, %v574
        %v648 = vmax.f32 %v643, %v645
        %v649 = vmax.f32 %v647, %v648
        %vm650 = vcmask 650240
        %651 = vst.msk [vmem:[#allocation2] sm:$0xf] %vm650, %v649
        %653 = vrot.lane.b32.xlu0 %v649, 127
        %v654 = vpop.permute.xlu0 %653
        %656 = vst.msk [vmem:[#allocation2 + $0x4] sm:$0xf] %vm650, %v654
        %657 = vrot.lane.b32.xlu0 %v649, 126
        %v658 = vpop.permute.xlu0 %657
        %660 = vst.msk [vmem:[#allocation2 + $0x8] sm:$0xf] %vm650, %v658
        %661 = vrot.lane.b32.xlu0 %v649, 118
        %v662 = vpop.permute.xlu0 %661
        %664 = vst.msk [vmem:[#allocation2 + $0xc] sm:$0xf] %vm650, %v662
        %665 = vrot.lane.b32.xlu0 %v649, 117
        %v666 = vpop.permute.xlu0 %665
        %668 = vst.msk [vmem:[#allocation2 + $0x10] sm:$0xf] %vm650, %v666
        %669 = vrot.lane.b32.xlu0 %v649, 116
        %v670 = vpop.permute.xlu0 %669
        %672 = vst.msk [vmem:[#allocation2 + $0x14] sm:$0xf] %vm650, %v670
        %673 = vrot.lane.b32.xlu0 %v649, 108
        %v674 = vpop.permute.xlu0 %673
        %676 = vst.msk [vmem:[#allocation2 + $0x18] sm:$0xf] %vm650, %v674
        %677 = vrot.lane.b32.xlu0 %v649, 107
        %v678 = vpop.permute.xlu0 %677
        %680 = vst.msk [vmem:[#allocation2 + $0x1c] sm:$0xf] %vm650, %v678
        %681 = vrot.lane.b32.xlu0 %v649, 106
        %v682 = vpop.permute.xlu0 %681
        %684 = vst.msk [vmem:[#allocation2 + $0x20] sm:$0xf] %vm650, %v682
        %v685 = vld [vmem:[%s4] sm:$0xff]
        %v686 = vld [vmem:[#allocation2] sm:$0xff]
        %v687 = vld [vmem:[#allocation2 + $0x8] sm:$0xff]
        %v688 = vld [vmem:[#allocation2 + $0x10] sm:$0xff]
        %v689 = vld [vmem:[#allocation2 + $0x18] sm:$0xff]
        %v690 = vld [vmem:[#allocation2 + $0x20] sm:$0xf]
        %vm691 = vcmask 293888
        %v693 = vsel %vm691, %v685, 0
        %vm695 = vcmask 1043456
        %v697 = vsel %vm695, %v690, 0
        %699 = vmatprep.subr.mxu0 0.0
        %700 = vmatpush1.msra.mxu0 0.0
        %701 = vmatprep.subr.mxu0 0.0
        %702 = vmatpush1.msra.mxu0 0.0
        %703 = vmatprep.subr.mxu0 0.0
        %704 = vmatpush1.msra.mxu0 0.0
        %705 = vmatprep.subr.mxu0 0.0
        %706 = vmatpush1.msra.mxu0 0.0
        %707 = vmatprep.subr.mxu0 0.0
        %708 = vmatpush1.msra.mxu0 0.0
        %709 = vmatprep.subr.mxu0 0.0
        %710 = vmatpush1.msra.mxu0 0.0
        %711 = vmatprep.subr.mxu0 0.0
        %712 = vmatpush1.msra.mxu0 0.0
        %713 = vmatprep.subr.mxu0 0.0
        %714 = vmatpush1.msra.mxu0 0.0
        %715 = vmatprep.subr.mxu0 0.0
        %716 = vmatpush1.msra.mxu0 0.0
        %717 = vmatprep.subr.mxu0 0.0
        %718 = vmatpush1.msra.mxu0 0.0
        %719 = vmatprep.subr.mxu0 0.0
        %720 = vmatpush1.msra.mxu0 0.0
        %721 = vmatprep.subr.mxu0 0.0
        %722 = vmatpush1.msra.mxu0 %v697
        %723 = vmatprep.subr.mxu0 0.0
        %724 = vmatpush1.msra.mxu0 %v689
        %725 = vmatprep.subr.mxu0 0.0
        %726 = vmatpush1.msra.mxu0 %v688
        %727 = vmatprep.subr.mxu0 0.0
        %728 = vmatpush1.msra.mxu0 %v687
        %729 = vmatprep.subr.mxu0 0.0
        %730 = vmatpush1.msra.mxu0 %v686
        %731 = vmatprep.subr.mxu0 0.0
        %732 = vmatpush2.msra.mxu0 0.0
        %733 = vmatprep.subr.mxu0 0.0
        %734 = vmatpush2.msra.mxu0 0.0
        %735 = vmatprep.subr.mxu0 0.0
        %736 = vmatpush2.msra.mxu0 0.0
        %737 = vmatprep.subr.mxu0 0.0
        %738 = vmatpush2.msra.mxu0 0.0
        %739 = vmatprep.subr.mxu0 0.0
        %740 = vmatpush2.msra.mxu0 0.0
        %741 = vmatprep.subr.mxu0 0.0
        %742 = vmatpush2.msra.mxu0 0.0
        %743 = vmatprep.subr.mxu0 0.0
        %744 = vmatpush2.msra.mxu0 0.0
        %745 = vmatprep.subr.mxu0 0.0
        %746 = vmatpush2.msra.mxu0 0.0
        %747 = vmatprep.subr.mxu0 0.0
        %748 = vmatpush2.msra.mxu0 0.0
        %749 = vmatprep.subr.mxu0 0.0
        %750 = vmatpush2.msra.mxu0 0.0
        %751 = vmatprep.subr.mxu0 0.0
        %752 = vmatpush2.msra.mxu0 0.0
        %753 = vmatprep.subr.mxu0 0.0
        %754 = vmatpush2.msra.mxu0 0.0
        %755 = vmatprep.subr.mxu0 0.0
        %756 = vmatpush2.msra.mxu0 0.0
        %757 = vmatprep.subr.mxu0 0.0
        %758 = vmatpush2.msra.mxu0 0.0
        %759 = vmatprep.subr.mxu0 0.0
        %760 = vmatpush2.msra.mxu0 0.0
        %761 = vmatprep.subr.mxu0 0.0
        %762 = vmatpush2.msra.mxu0 0.0
        %763 = vmatprep.mubr.f32.mxu0 0.0
        %764 = vmatmul.mubr.f32.gmra.mxu0 %v693
        %v765 = vpop.f32.mrf.mxu0
        %v766 = vadd.f32 0.0, %v765
        %v767 = vpop.f32.mrf.mxu0
        %768 = vdwg.mxu0
        %v769 = vld [vmem:[%s5] sm:$0xff]
        %771 = vset.pattern.permute.xlu0 0
        %772 = vperm.xlu0 %771, %v769
        %v773 = vpop.permute.xlu0 %772
        %v775 = vmul.f32 %v766, %v773
        %v776 = vld [vmem:[%s6] sm:$0xff]
        %778 = vset.pattern.permute.xlu0 0
        %779 = vperm.xlu0 %778, %v776
        %v780 = vpop.permute.xlu0 %779
        %v782 = vadd.f32 %v775, %v780
        %v783 = vmax.f32 %v782, 0.0
        %v784 = vld [vmem:[%s2] sm:$0xff]
        %v785 = vld [vmem:[%s2 + $0x8] sm:$0xff]
        %v786 = vld [vmem:[%s2 + $0x10] sm:$0xff]
        %v787 = vld [vmem:[%s2 + $0x18] sm:$0xff]
        %v788 = vld [vmem:[%s2 + $0x20] sm:$0xff]
        %v789 = vld [vmem:[%s2 + $0x28] sm:$0xff]
        %v790 = vld [vmem:[%s2 + $0x30] sm:$0xff]
        %v791 = vld [vmem:[%s2 + $0x38] sm:$0xff]
        %v792 = vld [vmem:[%s2 + $0x40] sm:$0xff]
        %v793 = vld [vmem:[%s2 + $0x48] sm:$0xff]
        %vm794 = vcmask 654336
        %v796 = vsel %vm794, %v783, 0
        %798 = vmatprep.subr.mxu0 0.0
        %799 = vmatpush1.msra.mxu0 0.0
        %800 = vmatprep.subr.mxu0 0.0
        %801 = vmatpush1.msra.mxu0 0.0
        %802 = vmatprep.subr.mxu0 0.0
        %803 = vmatpush1.msra.mxu0 0.0
        %804 = vmatprep.subr.mxu0 0.0
        %805 = vmatpush1.msra.mxu0 0.0
        %806 = vmatprep.subr.mxu0 0.0
        %807 = vmatpush1.msra.mxu0 0.0
        %808 = vmatprep.subr.mxu0 0.0
        %809 = vmatpush1.msra.mxu0 0.0
        %810 = vmatprep.subr.mxu0 0.0
        %811 = vmatpush1.msra.mxu0 %v793
        %812 = vmatprep.subr.mxu0 0.0
        %813 = vmatpush1.msra.mxu0 %v792
        %814 = vmatprep.subr.mxu0 0.0
        %815 = vmatpush1.msra.mxu0 %v791
        %816 = vmatprep.subr.mxu0 0.0
        %817 = vmatpush1.msra.mxu0 %v790
        %818 = vmatprep.subr.mxu0 0.0
        %819 = vmatpush1.msra.mxu0 %v789
        %820 = vmatprep.subr.mxu0 0.0
        %821 = vmatpush1.msra.mxu0 %v788
        %822 = vmatprep.subr.mxu0 0.0
        %823 = vmatpush1.msra.mxu0 %v787
        %824 = vmatprep.subr.mxu0 0.0
        %825 = vmatpush1.msra.mxu0 %v786
        %826 = vmatprep.subr.mxu0 0.0
        %827 = vmatpush1.msra.mxu0 %v785
        %828 = vmatprep.subr.mxu0 0.0
        %829 = vmatpush1.msra.mxu0 %v784
        %830 = vmatprep.subr.mxu0 0.0
        %831 = vmatpush2.msra.mxu0 0.0
        %832 = vmatprep.subr.mxu0 0.0
        %833 = vmatpush2.msra.mxu0 0.0
        %834 = vmatprep.subr.mxu0 0.0
        %835 = vmatpush2.msra.mxu0 0.0
        %836 = vmatprep.subr.mxu0 0.0
        %837 = vmatpush2.msra.mxu0 0.0
        %838 = vmatprep.subr.mxu0 0.0
        %839 = vmatpush2.msra.mxu0 0.0
        %840 = vmatprep.subr.mxu0 0.0
        %841 = vmatpush2.msra.mxu0 0.0
        %842 = vmatprep.subr.mxu0 0.0
        %843 = vmatpush2.msra.mxu0 0.0
        %844 = vmatprep.subr.mxu0 0.0
        %845 = vmatpush2.msra.mxu0 0.0
        %846 = vmatprep.subr.mxu0 0.0
        %847 = vmatpush2.msra.mxu0 0.0
        %848 = vmatprep.subr.mxu0 0.0
        %849 = vmatpush2.msra.mxu0 0.0
        %850 = vmatprep.subr.mxu0 0.0
        %851 = vmatpush2.msra.mxu0 0.0
        %852 = vmatprep.subr.mxu0 0.0
        %853 = vmatpush2.msra.mxu0 0.0
        %854 = vmatprep.subr.mxu0 0.0
        %855 = vmatpush2.msra.mxu0 0.0
        %856 = vmatprep.subr.mxu0 0.0
        %857 = vmatpush2.msra.mxu0 0.0
        %858 = vmatprep.subr.mxu0 0.0
        %859 = vmatpush2.msra.mxu0 0.0
        %860 = vmatprep.subr.mxu0 0.0
        %861 = vmatpush2.msra.mxu0 0.0
        %862 = vmatprep.mubr.f32.mxu0 0.0
        %863 = vmatmul.mubr.f32.gmra.mxu0 %v796
        %v864 = vpop.f32.mrf.mxu0
        %v865 = vadd.f32 0.0, %v864
        %v866 = vpop.f32.mrf.mxu0
        %867 = vdwg.mxu0
        %868 = vst.msk [vmem:[#allocation3] sm:$0xff] %vm794, %v865
        %870 = vrot.lane.b32.xlu0 %v865, 127
        %v871 = vpop.permute.xlu0 %870
        %873 = vst.msk [vmem:[#allocation3 + $0x8] sm:$0xff] %vm794, %v871
        %874 = vrot.lane.b32.xlu0 %v865, 126
        %v875 = vpop.permute.xlu0 %874
        %877 = vst.msk [vmem:[#allocation3 + $0x10] sm:$0xff] %vm794, %v875
        %878 = vrot.lane.b32.xlu0 %v865, 118
        %v879 = vpop.permute.xlu0 %878
        %881 = vst.msk [vmem:[#allocation3 + $0x18] sm:$0xff] %vm794, %v879
        %882 = vrot.lane.b32.xlu0 %v865, 117
        %v883 = vpop.permute.xlu0 %882
        %885 = vst.msk [vmem:[#allocation3 + $0x20] sm:$0xff] %vm794, %v883
        %886 = vrot.lane.b32.xlu0 %v865, 116
        %v887 = vpop.permute.xlu0 %886
        %889 = vst.msk [vmem:[#allocation3 + $0x28] sm:$0xff] %vm794, %v887
        %890 = vrot.lane.b32.xlu0 %v865, 108
        %v891 = vpop.permute.xlu0 %890
        %893 = vst.msk [vmem:[#allocation3 + $0x30] sm:$0xff] %vm794, %v891
        %894 = vrot.lane.b32.xlu0 %v865, 107
        %v895 = vpop.permute.xlu0 %894
        %897 = vst.msk [vmem:[#allocation3 + $0x38] sm:$0xff] %vm794, %v895
        %898 = vrot.lane.b32.xlu0 %v865, 106
        %v899 = vpop.permute.xlu0 %898
        %901 = vst.msk [vmem:[#allocation3 + $0x40] sm:$0xff] %vm794, %v899
        %v902 = vld [vmem:[%s7] sm:$0xff]
        %v903 = vld [vmem:[#allocation3] sm:$0xff]
        %v904 = vld [vmem:[#allocation3 + $0x8] sm:$0xff]
        %v905 = vld [vmem:[#allocation3 + $0x10] sm:$0xff]
        %v906 = vld [vmem:[#allocation3 + $0x18] sm:$0xff]
        %v907 = vld [vmem:[#allocation3 + $0x20] sm:$0xff]
        %v908 = vld [vmem:[#allocation3 + $0x28] sm:$0xff]
        %v909 = vld [vmem:[#allocation3 + $0x30] sm:$0xff]
        %v910 = vld [vmem:[#allocation3 + $0x38] sm:$0xff]
        %v911 = vld [vmem:[#allocation3 + $0x40] sm:$0xff]
        %vm912 = vcmask 588800
        %v914 = vsel %vm912, %v902, 0
        %916 = vmatprep.subr.mxu0 0.0
        %917 = vmatpush1.msra.mxu0 0.0
        %918 = vmatprep.subr.mxu0 0.0
        %919 = vmatpush1.msra.mxu0 0.0
        %920 = vmatprep.subr.mxu0 0.0
        %921 = vmatpush1.msra.mxu0 0.0
        %922 = vmatprep.subr.mxu0 0.0
        %923 = vmatpush1.msra.mxu0 0.0
        %924 = vmatprep.subr.mxu0 0.0
        %925 = vmatpush1.msra.mxu0 0.0
        %926 = vmatprep.subr.mxu0 0.0
        %927 = vmatpush1.msra.mxu0 0.0
        %928 = vmatprep.subr.mxu0 0.0
        %929 = vmatpush1.msra.mxu0 0.0
        %930 = vmatprep.subr.mxu0 0.0
        %931 = vmatpush1.msra.mxu0 %v911
        %932 = vmatprep.subr.mxu0 0.0
        %933 = vmatpush1.msra.mxu0 %v910
        %934 = vmatprep.subr.mxu0 0.0
        %935 = vmatpush1.msra.mxu0 %v909
        %936 = vmatprep.subr.mxu0 0.0
        %937 = vmatpush1.msra.mxu0 %v908
        %938 = vmatprep.subr.mxu0 0.0
        %939 = vmatpush1.msra.mxu0 %v907
        %940 = vmatprep.subr.mxu0 0.0
        %941 = vmatpush1.msra.mxu0 %v906
        %942 = vmatprep.subr.mxu0 0.0
        %943 = vmatpush1.msra.mxu0 %v905
        %944 = vmatprep.subr.mxu0 0.0
        %945 = vmatpush1.msra.mxu0 %v904
        %946 = vmatprep.subr.mxu0 0.0
        %947 = vmatpush1.msra.mxu0 %v903
        %948 = vmatprep.subr.mxu0 0.0
        %949 = vmatpush2.msra.mxu0 0.0
        %950 = vmatprep.subr.mxu0 0.0
        %951 = vmatpush2.msra.mxu0 0.0
        %952 = vmatprep.subr.mxu0 0.0
        %953 = vmatpush2.msra.mxu0 0.0
        %954 = vmatprep.subr.mxu0 0.0
        %955 = vmatpush2.msra.mxu0 0.0
        %956 = vmatprep.subr.mxu0 0.0
        %957 = vmatpush2.msra.mxu0 0.0
        %958 = vmatprep.subr.mxu0 0.0
        %959 = vmatpush2.msra.mxu0 0.0
        %960 = vmatprep.subr.mxu0 0.0
        %961 = vmatpush2.msra.mxu0 0.0
        %962 = vmatprep.subr.mxu0 0.0
        %963 = vmatpush2.msra.mxu0 0.0
        %964 = vmatprep.subr.mxu0 0.0
        %965 = vmatpush2.msra.mxu0 0.0
        %966 = vmatprep.subr.mxu0 0.0
        %967 = vmatpush2.msra.mxu0 0.0
        %968 = vmatprep.subr.mxu0 0.0
        %969 = vmatpush2.msra.mxu0 0.0
        %970 = vmatprep.subr.mxu0 0.0
        %971 = vmatpush2.msra.mxu0 0.0
        %972 = vmatprep.subr.mxu0 0.0
        %973 = vmatpush2.msra.mxu0 0.0
        %974 = vmatprep.subr.mxu0 0.0
        %975 = vmatpush2.msra.mxu0 0.0
        %976 = vmatprep.subr.mxu0 0.0
        %977 = vmatpush2.msra.mxu0 0.0
        %978 = vmatprep.subr.mxu0 0.0
        %979 = vmatpush2.msra.mxu0 0.0
        %980 = vmatprep.mubr.f32.mxu0 0.0
        %981 = vmatmul.mubr.f32.gmra.mxu0 %v914
        %v982 = vpop.f32.mrf.mxu0
        %v983 = vadd.f32 0.0, %v982
        %v984 = vpop.f32.mrf.mxu0
        %985 = vdwg.mxu0
        %v986 = vld [vmem:[%s8] sm:$0xff]
        %988 = vset.pattern.permute.xlu0 0
        %989 = vperm.xlu0 %988, %v986
        %v990 = vpop.permute.xlu0 %989
        %v992 = vmul.f32 %v983, %v990
        %v993 = vld [vmem:[%s9] sm:$0xff]
        %995 = vset.pattern.permute.xlu0 0
        %996 = vperm.xlu0 %995, %v993
        %v997 = vpop.permute.xlu0 %996
        %v999 = vadd.f32 %v992, %v997
        %v1000 = vmax.f32 %v999, 0.0
        %v1001 = vld [vmem:[%s3] sm:$0xff]
        %v1002 = vld [vmem:[%s3 + $0x8] sm:$0xff]
        %v1003 = vld [vmem:[%s3 + $0x10] sm:$0xff]
        %v1004 = vld [vmem:[%s3 + $0x18] sm:$0xff]
        %v1005 = vld [vmem:[%s3 + $0x20] sm:$0xff]
        %v1006 = vld [vmem:[%s3 + $0x28] sm:$0xff]
        %v1007 = vld [vmem:[%s3 + $0x30] sm:$0xff]
        %v1008 = vld [vmem:[%s3 + $0x38] sm:$0xff]
        %v1009 = vld [vmem:[%s3 + $0x40] sm:$0xff]
        %v1010 = vld [vmem:[%s3 + $0x48] sm:$0xff]
        %v1012 = vsel %vm794, %v1000, 0
        %1014 = vmatprep.subr.mxu0 0.0
        %1015 = vmatpush1.msra.mxu0 0.0
        %1016 = vmatprep.subr.mxu0 0.0
        %1017 = vmatpush1.msra.mxu0 0.0
        %1018 = vmatprep.subr.mxu0 0.0
        %1019 = vmatpush1.msra.mxu0 0.0
        %1020 = vmatprep.subr.mxu0 0.0
        %1021 = vmatpush1.msra.mxu0 0.0
        %1022 = vmatprep.subr.mxu0 0.0
        %1023 = vmatpush1.msra.mxu0 0.0
        %1024 = vmatprep.subr.mxu0 0.0
        %1025 = vmatpush1.msra.mxu0 0.0
        %1026 = vmatprep.subr.mxu0 0.0
        %1027 = vmatpush1.msra.mxu0 %v1010
        %1028 = vmatprep.subr.mxu0 0.0
        %1029 = vmatpush1.msra.mxu0 %v1009
        %1030 = vmatprep.subr.mxu0 0.0
        %1031 = vmatpush1.msra.mxu0 %v1008
        %1032 = vmatprep.subr.mxu0 0.0
        %1033 = vmatpush1.msra.mxu0 %v1007
        %1034 = vmatprep.subr.mxu0 0.0
        %1035 = vmatpush1.msra.mxu0 %v1006
        %1036 = vmatprep.subr.mxu0 0.0
        %1037 = vmatpush1.msra.mxu0 %v1005
        %1038 = vmatprep.subr.mxu0 0.0
        %1039 = vmatpush1.msra.mxu0 %v1004
        %1040 = vmatprep.subr.mxu0 0.0
        %1041 = vmatpush1.msra.mxu0 %v1003
        %1042 = vmatprep.subr.mxu0 0.0
        %1043 = vmatpush1.msra.mxu0 %v1002
        %1044 = vmatprep.subr.mxu0 0.0
        %1045 = vmatpush1.msra.mxu0 %v1001
        %1046 = vmatprep.subr.mxu0 0.0
        %1047 = vmatpush2.msra.mxu0 0.0
        %1048 = vmatprep.subr.mxu0 0.0
        %1049 = vmatpush2.msra.mxu0 0.0
        %1050 = vmatprep.subr.mxu0 0.0
        %1051 = vmatpush2.msra.mxu0 0.0
        %1052 = vmatprep.subr.mxu0 0.0
        %1053 = vmatpush2.msra.mxu0 0.0
        %1054 = vmatprep.subr.mxu0 0.0
        %1055 = vmatpush2.msra.mxu0 0.0
        %1056 = vmatprep.subr.mxu0 0.0
        %1057 = vmatpush2.msra.mxu0 0.0
        %1058 = vmatprep.subr.mxu0 0.0
        %1059 = vmatpush2.msra.mxu0 0.0
        %1060 = vmatprep.subr.mxu0 0.0
        %1061 = vmatpush2.msra.mxu0 0.0
        %1062 = vmatprep.subr.mxu0 0.0
        %1063 = vmatpush2.msra.mxu0 0.0
        %1064 = vmatprep.subr.mxu0 0.0
        %1065 = vmatpush2.msra.mxu0 0.0
        %1066 = vmatprep.subr.mxu0 0.0
        %1067 = vmatpush2.msra.mxu0 0.0
        %1068 = vmatprep.subr.mxu0 0.0
        %1069 = vmatpush2.msra.mxu0 0.0
        %1070 = vmatprep.subr.mxu0 0.0
        %1071 = vmatpush2.msra.mxu0 0.0
        %1072 = vmatprep.subr.mxu0 0.0
        %1073 = vmatpush2.msra.mxu0 0.0
        %1074 = vmatprep.subr.mxu0 0.0
        %1075 = vmatpush2.msra.mxu0 0.0
        %1076 = vmatprep.subr.mxu0 0.0
        %1077 = vmatpush2.msra.mxu0 0.0
        %1078 = vmatprep.mubr.f32.mxu0 0.0
        %1079 = vmatmul.mubr.f32.gmra.mxu0 %v1012
        %v1080 = vpop.f32.mrf.mxu0
        %v1081 = vadd.f32 0.0, %v1080
        %v1082 = vpop.f32.mrf.mxu0
        %1083 = vdwg.mxu0
        %1084 = vst [vmem:[%s372] sm:$0xff] %v1081
        %p1085 = scmp.lt.s32.totalorder %s22, 1
        %s1086 = scalar_select %p1085, %s22, 1
        %s1087 = smul.addr %s1086, 8
        %s1088 = scalar_lea.vmem %s10, %s1087
        // Predicated region
        $region65: #{down_forward.1} parent=59 // pred_check
          %p1089 = pneg %p255
        $region66: #{down_forward.1} parent=59 // pred_check_branch
          %1091 = sbr.rel (%p1089) target = $region68
        $region67: #{down_forward.1} parent=59 // pred_region
          _
        $region68: #{down_forward.1} parent=59 // pred_fallthru
          _
      $region60: #{down_forward.1} parent=5 // pred_fallthru
        _
      %p1092 = scmp.le.s32.totalorder 2, %s17
      // Predicated region
      $region69: #{down_forward.1} parent=5 // pred_check
        %p1093 = pneg %p1092
      $region70: #{down_forward.1} parent=5 // pred_check_branch
        %1095 = sbr.rel (%p1093) target = $region72
      $region71: #{down_forward.1} parent=5 // pred_region
        %s1096 = ssub.s32 %s17, 2
        // Predicated region
        $region73: #{down_forward.1} parent=71 // pred_check
          %p1097 = pneg %p261
        $region74: #{down_forward.1} parent=71 // pred_check_branch
          %1099 = sbr.rel (%p1097) target = $region76
        $region75: #{down_forward.1} parent=71 // pred_region
          %p1100 = scmp.lt.s32.totalorder %s23, 1
          %s1101 = scalar_select %p1100, %s23, 1
          %s1102 = smul.addr %s1101, 8
          %s1103 = scalar_lea.vmem %s10, %s1102
        $region76: #{down_forward.1} parent=71 // pred_fallthru
          _
      $region72: #{down_forward.1} parent=5 // pred_fallthru
        _
    $region6: #{down_forward.1} parent=1 // loop_footer
      %s21 = sadd.s32 1, %s17
    $region7: #{down_forward.1} parent=1 // loop_footer_branch
      %16 = sbr.rel target = $region3
    $region8: #{down_forward.1} parent=1 // loop_exit
      _
    %1104 = vsyncpa [#allocation5], 1
    %s1105 = scalar_lea.sflag [#allocation5], 1
    %1106 = vsyncpa %s1105, 1

</llo_original>
